<compile_context>
chip_gen: v7x
topology: tpu7x:2x2x1
jax: 0.10.0
libtpu: 0.0.40
codegen_flags: <defaults>
</compile_context>

<pallas_src>
import functools

import jax
import jax.numpy as jnp
from jax import lax
from jax.experimental import pallas as pl
from jax.experimental.pallas import tpu as pltpu


def transformer_block_kernel(
    x_ref,                       # (Bt, T, E)  input dtype
    ln1g_ref, ln1b_ref,          # (1, E) f32
    wqkv_ref,                    # (E, 3E) bf16  -- [wq | wk | wv]
    wp_ref, bp_ref,              # (E, E) bf16, (1, E) f32
    ln2g_ref, ln2b_ref,          # (1, E) f32
    w1_ref, b1_ref,              # (E, 4E) bf16, (1, 4E) f32
    w2_ref, b2_ref,              # (4E, E) bf16, (1, E) f32
    o_ref,                       # (Bt, T, E)
    att_sc,                      # (Bt*T, E) bf16 scratch: head->lane re-assembled attention
    *,
    num_heads: int,
    head_dim: int,
):
    Bt, T, E = x_ref.shape
    H, hd = num_heads, head_dim
    M = Bt * T
    eps = 1e-5

    x = x_ref[...].astype(jnp.float32).reshape(M, E)

    # ---- LayerNorm 1 (f32 elementwise) ----
    mu1 = jnp.mean(x, axis=-1, keepdims=True)
    var1 = jnp.mean((x - mu1) ** 2, axis=-1, keepdims=True)
    h1 = (x - mu1) * lax.rsqrt(var1 + eps) * ln1g_ref[...] + ln1b_ref[...]

    # ---- Fused Q/K/V projection: one lane-dense (M,E)@(E,3E) matmul, f32 MXU
    #      accumulation, a single bf16 down-cast of the result slab. ----
    qkv = jnp.dot(h1.astype(jnp.bfloat16), wqkv_ref[...],
                  preferred_element_type=jnp.float32).astype(jnp.bfloat16)   # (M, 3E)

    # Causal mask, shared across heads (hoisted out of the head loop).
    row = lax.broadcasted_iota(jnp.int32, (T, T), 0)
    col = lax.broadcasted_iota(jnp.int32, (T, T), 1)
    causal = (col <= row)[None]                                  # (1, T, T)
    scale = head_dim ** -0.5

    # ---- Per-head causal attention (score/PV contractions are inherently K = hd).
    #      Each head writes its output into the lane slice [h*hd, (h+1)*hd) of the
    #      (M, E) scratch slab -> head->lane re-assembly without concat/transpose. ----
    for h in range(H):
        qh = qkv[:, h * hd:(h + 1) * hd].reshape(Bt, T, hd)
        kh = qkv[:, E + h * hd:E + (h + 1) * hd].reshape(Bt, T, hd)
        vh = qkv[:, 2 * E + h * hd:2 * E + (h + 1) * hd].reshape(Bt, T, hd)

        s = jnp.einsum("bqd,bkd->bqk", qh, kh,
                       preferred_element_type=jnp.float32) * scale          # (Bt,T,T) f32
        s = jnp.where(causal, s, -1e30)                                      # causal mask on f32
        m = jnp.max(s, axis=-1, keepdims=True)
        p = jnp.exp(s - m)
        p = p * pl.reciprocal(jnp.sum(p, axis=-1, keepdims=True), approx=True)

        ah = jnp.einsum("bqk,bkd->bqd", p.astype(jnp.bfloat16), vh,
                        preferred_element_type=jnp.float32)                  # (Bt,T,hd)
        att_sc[:, h * hd:(h + 1) * hd] = ah.astype(jnp.bfloat16).reshape(M, hd)

    # ---- Output projection: ONE (M,E)@(E,E) matmul with K=E (good MXU shape). ----
    proj = jnp.dot(att_sc[...], wp_ref[...],
                   preferred_element_type=jnp.float32) + bp_ref[...]

    x1 = x + proj                                                # residual 1 (f32)

    # ---- LayerNorm 2 (f32) ----
    mu2 = jnp.mean(x1, axis=-1, keepdims=True)
    var2 = jnp.mean((x1 - mu2) ** 2, axis=-1, keepdims=True)
    h2 = (x1 - mu2) * lax.rsqrt(var2 + eps) * ln2g_ref[...] + ln2b_ref[...]

    # ---- FeedForward: Linear -> ReLU -> Linear on the flat (M, E) slab ----
    ff = jnp.dot(h2.astype(jnp.bfloat16), w1_ref[...],
                 preferred_element_type=jnp.float32) + b1_ref[...]
    ff = jnp.maximum(ff, 0.0)
    ff = jnp.dot(ff.astype(jnp.bfloat16), w2_ref[...],
                 preferred_element_type=jnp.float32) + b2_ref[...]

    o_ref[...] = (x1 + ff).reshape(Bt, T, E).astype(o_ref.dtype)


# ----------------------------- host-side helpers -----------------------------

def prepare_params(params):
    """One-time weight layout / dtype prep (hoisted out of the per-call path)."""
    bf16, f32 = jnp.bfloat16, jnp.float32
    return {
        "ln1_g": params["ln1_g"].astype(f32),
        "ln1_b": params["ln1_b"].astype(f32),
        "wqkv": jnp.concatenate([params["wq"], params["wk"], params["wv"]],
                                axis=1).astype(bf16),            # (E, 3E)
        "wp": params["wp"].astype(bf16),
        "bp": params["bp"].astype(f32),
        "ln2_g": params["ln2_g"].astype(f32),
        "ln2_b": params["ln2_b"].astype(f32),
        "w1": params["w1"].astype(bf16),
        "b1": params["b1"].astype(f32),
        "w2": params["w2"].astype(bf16),
        "b2": params["b2"].astype(f32),
    }


def _vmem_capacity_bytes():
    try:
        return int(pltpu.get_tpu_info().vmem_capacity_bytes)
    except Exception:
        return 64 * 2**20        # conservative fallback: v7x has 64 MiB per TensorCore


def _vmem_estimate_bytes(Bt, T, E, H):
    """Rough per-grid-step working set: double-buffered bf16 weights + f32 activations."""
    Eh, hd = 4 * E, E // H
    M = Bt * T
    weights = 2 * 2 * (3 * E * E + E * E + E * Eh + Eh * E)      # bf16, double-buffered
    io = 2 * 2 * Bt * T * E * 4                                  # x/out blocks, double-buffered
    acts = 4 * M * (12 * E + 5 * Eh) + 4 * Bt * H * T * (2 * T + 3 * hd)
    return weights + io + acts


def _pick_block_batch(B, T, E, H, vmem_budget):
    divisors = [d for d in range(1, B + 1) if B % d == 0]
    row_target = 256   # fills the 256-wide MXU M dim on v6e/v7x (v5e only needs 128)
    pick = 1
    for d in divisors:
        if d * T <= max(row_target, T):
            pick = d
    # Shrink while the working set overflows the chip's VMEM budget, or (when B allows)
    # to keep >= 2 grid steps so the 2 TensorCores on v7x both get work.
    while pick > 1 and (_vmem_estimate_bytes(pick, T, E, H) > vmem_budget or B // pick < 2):
        pick = max(d for d in divisors if d < pick)
    return pick


def transformer_block(x, prepared, *, num_heads: int, block_batch=None):
    B, T, E = x.shape
    H = num_heads
    hd = E // H
    Eh = 4 * E

    vmem_cap = _vmem_capacity_bytes()
    vmem_budget = int(0.85 * vmem_cap)                           # generation-aware budget
    Bt = block_batch if block_batch is not None else _pick_block_batch(B, T, E, H, vmem_budget)
    assert B % Bt == 0
    grid = (B // Bt,)

    kernel = functools.partial(transformer_block_kernel, num_heads=H, head_dim=hd)

    def const_spec(shape):
        # index_map constant in the grid index -> block is only DMA'd once across the grid.
        return pl.BlockSpec(shape, lambda b: (0,) * len(shape))

    in_specs = [
        pl.BlockSpec((Bt, T, E), lambda b: (b, 0, 0)),           # x
        const_spec((1, E)), const_spec((1, E)),                  # ln1 gamma/beta
        const_spec((E, 3 * E)),                                  # wqkv
        const_spec((E, E)), const_spec((1, E)),                  # wp, bp
        const_spec((1, E)), const_spec((1, E)),                  # ln2 gamma/beta
        const_spec((E, Eh)), const_spec((1, Eh)),                # ff w1, b1
        const_spec((Eh, E)), const_spec((1, E)),                 # ff w2, b2
    ]

    vmem_limit = int(min(vmem_budget,
                         max(32 * 2**20, 2 * _vmem_estimate_bytes(Bt, T, E, H))))

    return pl.pallas_call(
        kernel,
        out_shape=jax.ShapeDtypeStruct((B, T, E), x.dtype),
        grid_spec=pltpu.PrefetchScalarGridSpec(
            num_scalar_prefetch=0,
            grid=grid,
            in_specs=in_specs,
            out_specs=pl.BlockSpec((Bt, T, E), lambda b: (b, 0, 0)),
            scratch_shapes=[pltpu.VMEM((Bt * T, E), jnp.bfloat16)],
        ),
        compiler_params=pltpu.CompilerParams(
            dimension_semantics=("parallel",),
            vmem_limit_bytes=vmem_limit,
        ),
    )(
        x,
        prepared["ln1_g"], prepared["ln1_b"],
        prepared["wqkv"],
        prepared["wp"], prepared["bp"],
        prepared["ln2_g"], prepared["ln2_b"],
        prepared["w1"], prepared["b1"],
        prepared["w2"], prepared["b2"],
    )


# ----------------------------- reference & test -----------------------------

def reference_block(x, params, *, num_heads: int):
    """Pure-JAX f32 reference for correctness checking."""
    B, T, E = x.shape
    hd = E // num_heads
    eps = 1e-5

    def ln(v, g, b):
        mu = jnp.mean(v, axis=-1, keepdims=True)
        var = jnp.mean((v - mu) ** 2, axis=-1, keepdims=True)
        return (v - mu) / jnp.sqrt(var + eps) * g[0] + b[0]

    h1 = ln(x, params["ln1_g"], params["ln1_b"])
    q = h1 @ params["wq"]
    k = h1 @ params["wk"]
    v = h1 @ params["wv"]
    q = q.reshape(B, T, num_heads, hd).transpose(0, 2, 1, 3)
    k = k.reshape(B, T, num_heads, hd).transpose(0, 2, 1, 3)
    v = v.reshape(B, T, num_heads, hd).transpose(0, 2, 1, 3)
    s = jnp.einsum("bhqd,bhkd->bhqk", q, k) * (hd ** -0.5)
    mask = jnp.tril(jnp.ones((T, T), bool))
    s = jnp.where(mask, s, -1e30)
    p = jax.nn.softmax(s, axis=-1)
    att = jnp.einsum("bhqk,bhkd->bhqd", p, v).transpose(0, 2, 1, 3).reshape(B, T, E)
    x1 = x + att @ params["wp"] + params["bp"][0]
    h2 = ln(x1, params["ln2_g"], params["ln2_b"])
    ff = jnp.maximum(h2 @ params["w1"] + params["b1"][0], 0.0) @ params["w2"] + params["b2"][0]
    return x1 + ff


def init_params(key, n_embed: int):
    E, Eh = n_embed, 4 * n_embed
    ks = jax.random.split(key, 8)
    scale = 0.05
    return {
        "ln1_g": jnp.ones((1, E), jnp.float32),
        "ln1_b": jnp.zeros((1, E), jnp.float32),
        "wq": scale * jax.random.normal(ks[0], (E, E), jnp.float32),
        "wk": scale * jax.random.normal(ks[1], (E, E), jnp.float32),
        "wv": scale * jax.random.normal(ks[2], (E, E), jnp.float32),
        "wp": scale * jax.random.normal(ks[3], (E, E), jnp.float32),
        "bp": scale * jax.random.normal(ks[4], (1, E), jnp.float32),
        "ln2_g": jnp.ones((1, E), jnp.float32),
        "ln2_b": jnp.zeros((1, E), jnp.float32),
        "w1": scale * jax.random.normal(ks[5], (E, Eh), jnp.float32),
        "b1": jnp.zeros((1, Eh), jnp.float32),
        "w2": scale * jax.random.normal(ks[6], (Eh, E), jnp.float32),
        "b2": jnp.zeros((1, E), jnp.float32),
    }


if __name__ == "__main__":
    B, T, E, num_heads = 2, 8, 32, 4   # block_size=T=8, n_embed=32, hidden_dim=8
    key = jax.random.PRNGKey(0)
    kx, kp = jax.random.split(key)
    x = jax.random.normal(kx, (B, T, E), jnp.float32)
    params = init_params(kp, E)
    prepared = prepare_params(params)   # weight concat/cast hoisted out of the call path

    out = transformer_block(x, prepared, num_heads=num_heads)
    out = jax.block_until_ready(out)

    ref = reference_block(x, params, num_heads=num_heads)
    assert out.shape == (B, T, E)
    # bf16 matmul operands (f32 accumulation) + approx reciprocal -> relaxed tolerance.
    max_diff = float(jnp.max(jnp.abs(out - ref)))
    assert jnp.allclose(out, ref, atol=2e-2, rtol=2e-2), f"mismatch vs reference: {max_diff}"
    print("KERNEL_OK")
</pallas_src>

<mosaic_0001>
module attributes {stable_mosaic.version = 11 : i64} {
  func.func @transformer_block_kernel(%arg0: i32, %arg1: memref<1x8x32xf32, #tpu.memory_space<vmem>>, %arg2: memref<1x32xf32, #tpu.memory_space<vmem>>, %arg3: memref<1x32xf32, #tpu.memory_space<vmem>>, %arg4: memref<32x96xbf16, #tpu.memory_space<vmem>>, %arg5: memref<32x32xbf16, #tpu.memory_space<vmem>>, %arg6: memref<1x32xf32, #tpu.memory_space<vmem>>, %arg7: memref<1x32xf32, #tpu.memory_space<vmem>>, %arg8: memref<1x32xf32, #tpu.memory_space<vmem>>, %arg9: memref<32x128xbf16, #tpu.memory_space<vmem>>, %arg10: memref<1x128xf32, #tpu.memory_space<vmem>>, %arg11: memref<128x32xbf16, #tpu.memory_space<vmem>>, %arg12: memref<1x32xf32, #tpu.memory_space<vmem>>, %arg13: memref<1x8x32xf32, #tpu.memory_space<vmem>>, %arg14: memref<8x32xbf16, #tpu.memory_space<vmem>>) attributes {dimension_semantics = [#tpu.dimension_semantics<parallel>], iteration_bounds = array<i64: 2>, scalar_prefetch = 0 : i64, scratch_operands = 1 : i64, tpu.core_type = #tpu.core_type<tc>, window_params = [{transform_indices = @transform_0, window_bounds = array<i64: 1, 8, 32>}, {pipeline_mode = #tpu.pipeline_mode<synchronous>, transform_indices = @transform_1, window_bounds = array<i64: 1, 32>}, {pipeline_mode = #tpu.pipeline_mode<synchronous>, transform_indices = @transform_2, window_bounds = array<i64: 1, 32>}, {pipeline_mode = #tpu.pipeline_mode<synchronous>, transform_indices = @transform_3, window_bounds = array<i64: 32, 96>}, {pipeline_mode = #tpu.pipeline_mode<synchronous>, transform_indices = @transform_4, window_bounds = array<i64: 32, 32>}, {pipeline_mode = #tpu.pipeline_mode<synchronous>, transform_indices = @transform_5, window_bounds = array<i64: 1, 32>}, {pipeline_mode = #tpu.pipeline_mode<synchronous>, transform_indices = @transform_6, window_bounds = array<i64: 1, 32>}, {pipeline_mode = #tpu.pipeline_mode<synchronous>, transform_indices = @transform_7, window_bounds = array<i64: 1, 32>}, {pipeline_mode = #tpu.pipeline_mode<synchronous>, transform_indices = @transform_8, window_bounds = array<i64: 32, 128>}, {pipeline_mode = #tpu.pipeline_mode<synchronous>, transform_indices = @transform_9, window_bounds = array<i64: 1, 128>}, {pipeline_mode = #tpu.pipeline_mode<synchronous>, transform_indices = @transform_10, window_bounds = array<i64: 128, 32>}, {pipeline_mode = #tpu.pipeline_mode<synchronous>, transform_indices = @transform_11, window_bounds = array<i64: 1, 32>}, {transform_indices = @transform_12, window_bounds = array<i64: 1, 8, 32>}]} {
    %c0 = arith.constant 0 : index
    %c0_0 = arith.constant 0 : index
    %c0_1 = arith.constant 0 : index
    %0 = vector.load %arg1[%c0, %c0_0, %c0_1] : memref<1x8x32xf32, #tpu.memory_space<vmem>>, vector<1x8x32xf32>
    %1 = vector.shape_cast %0 : vector<1x8x32xf32> to vector<8x32xf32>
    %cst = arith.constant dense<0.000000e+00> : vector<8xf32>
    %2 = vector.multi_reduction <add>, %1, %cst [1] : vector<8x32xf32> to vector<8xf32>
    %3 = vector.shape_cast %2 : vector<8xf32> to vector<8x1xf32>
    %cst_2 = arith.constant 3.200000e+01 : f32
    %4 = vector.broadcast %cst_2 : f32 to vector<8x1xf32>
    %5 = arith.divf %3, %4 : vector<8x1xf32>
    %6 = vector.broadcast %5 : vector<8x1xf32> to vector<8x32xf32>
    %7 = arith.subf %1, %6 : vector<8x32xf32>
    %8 = arith.mulf %7, %7 : vector<8x32xf32>
    %cst_3 = arith.constant dense<0.000000e+00> : vector<8xf32>
    %9 = vector.multi_reduction <add>, %8, %cst_3 [1] : vector<8x32xf32> to vector<8xf32>
    %10 = vector.shape_cast %9 : vector<8xf32> to vector<8x1xf32>
    %cst_4 = arith.constant 3.200000e+01 : f32
    %11 = vector.broadcast %cst_4 : f32 to vector<8x1xf32>
    %12 = arith.divf %10, %11 : vector<8x1xf32>
    %13 = vector.broadcast %5 : vector<8x1xf32> to vector<8x32xf32>
    %14 = arith.subf %1, %13 : vector<8x32xf32>
    %cst_5 = arith.constant 9.99999974E-6 : f32
    %15 = vector.broadcast %cst_5 : f32 to vector<8x1xf32>
    %16 = arith.addf %12, %15 : vector<8x1xf32>
    %17 = math.rsqrt %16 : vector<8x1xf32>
    %18 = vector.broadcast %17 : vector<8x1xf32> to vector<8x32xf32>
    %19 = arith.mulf %14, %18 : vector<8x32xf32>
    %c0_6 = arith.constant 0 : index
    %c0_7 = arith.constant 0 : index
    %20 = vector.load %arg2[%c0_6, %c0_7] : memref<1x32xf32, #tpu.memory_space<vmem>>, vector<1x32xf32>
    %21 = vector.broadcast %20 : vector<1x32xf32> to vector<8x32xf32>
    %22 = arith.mulf %19, %21 : vector<8x32xf32>
    %c0_8 = arith.constant 0 : index
    %c0_9 = arith.constant 0 : index
    %23 = vector.load %arg3[%c0_8, %c0_9] : memref<1x32xf32, #tpu.memory_space<vmem>>, vector<1x32xf32>
    %24 = vector.broadcast %23 : vector<1x32xf32> to vector<8x32xf32>
    %25 = arith.addf %22, %24 : vector<8x32xf32>
    %26 = arith.truncf %25 : vector<8x32xf32> to vector<8x32xbf16>
    %c0_10 = arith.constant 0 : index
    %c0_11 = arith.constant 0 : index
    %27 = vector.load %arg4[%c0_10, %c0_11] : memref<32x96xbf16, #tpu.memory_space<vmem>>, vector<32x96xbf16>
    %cst_12 = arith.constant dense<0.000000e+00> : vector<8x96xf32>
    %28 = tpu.matmul %26, %27, %cst_12 {dimension_numbers = #tpu.dot_dimension_numbers<[1], [0], [0], [1], [0, 0, 1, 1], [], []>} : vector<8x32xbf16>, vector<32x96xbf16>, vector<8x96xf32> -> vector<8x96xf32>
    %29 = arith.truncf %28 : vector<8x96xf32> to vector<8x96xbf16>
    %30 = tpu.iota {dimensions = array<i32: 0>} : vector<8x8xi32>
    %31 = tpu.iota {dimensions = array<i32: 1>} : vector<8x8xi32>
    %32 = arith.cmpi sle, %31, %30 : vector<8x8xi32>
    %33 = vector.shape_cast %32 : vector<8x8xi1> to vector<1x8x8xi1>
    %34 = vector.extract_strided_slice %29 {offsets = [0, 0], sizes = [8, 8], strides = [1, 1]} : vector<8x96xbf16> to vector<8x8xbf16>
    %35 = vector.shape_cast %34 : vector<8x8xbf16> to vector<1x8x8xbf16>
    %36 = vector.extract_strided_slice %29 {offsets = [0, 32], sizes = [8, 8], strides = [1, 1]} : vector<8x96xbf16> to vector<8x8xbf16>
    %37 = vector.shape_cast %36 : vector<8x8xbf16> to vector<1x8x8xbf16>
    %38 = vector.extract_strided_slice %29 {offsets = [0, 64], sizes = [8, 8], strides = [1, 1]} : vector<8x96xbf16> to vector<8x8xbf16>
    %39 = vector.shape_cast %38 : vector<8x8xbf16> to vector<1x8x8xbf16>
    "tpu.trace_start"() <{level = 10 : i32, message = "bqd,bkd->bqk"}> : () -> ()
    %cst_13 = arith.constant dense<0.000000e+00> : vector<1x8x8xf32>
    %40 = tpu.matmul %35, %37, %cst_13 {dimension_numbers = #tpu.dot_dimension_numbers<[2], [2], [1], [1], [0, 0, 0, 1, 1, 1], [0], [0]>} : vector<1x8x8xbf16>, vector<1x8x8xbf16>, vector<1x8x8xf32> -> vector<1x8x8xf32>
    "tpu.trace_stop"() : () -> ()
    %cst_14 = arith.constant 0.353553385 : f32
    %41 = vector.broadcast %cst_14 : f32 to vector<1x8x8xf32>
    %42 = arith.mulf %40, %41 : vector<1x8x8xf32>
    %cst_15 = arith.constant -1.000000e+30 : f32
    %43 = vector.broadcast %cst_15 : f32 to vector<1x8x8xf32>
    %44 = arith.select %33, %42, %43 : vector<1x8x8xi1>, vector<1x8x8xf32>
    %cst_16 = arith.constant dense<0xFF800000> : vector<1x8xf32>
    %45 = vector.multi_reduction <maximumf>, %44, %cst_16 [2] : vector<1x8x8xf32> to vector<1x8xf32>
    %46 = vector.shape_cast %45 : vector<1x8xf32> to vector<1x8x1xf32>
    %47 = vector.broadcast %46 : vector<1x8x1xf32> to vector<1x8x8xf32>
    %48 = arith.subf %44, %47 : vector<1x8x8xf32>
    %49 = math.exp %48 : vector<1x8x8xf32>
    %cst_17 = arith.constant dense<0.000000e+00> : vector<1x8xf32>
    %50 = vector.multi_reduction <add>, %49, %cst_17 [2] : vector<1x8x8xf32> to vector<1x8xf32>
    %51 = vector.shape_cast %50 : vector<1x8xf32> to vector<1x8x1xf32>
    %52 = tpu.reciprocal %51 {approx = true} : vector<1x8x1xf32> -> vector<1x8x1xf32>
    %53 = vector.broadcast %52 : vector<1x8x1xf32> to vector<1x8x8xf32>
    %54 = arith.mulf %49, %53 : vector<1x8x8xf32>
    %55 = arith.truncf %54 : vector<1x8x8xf32> to vector<1x8x8xbf16>
    "tpu.trace_start"() <{level = 10 : i32, message = "bqk,bkd->bqd"}> : () -> ()
    %cst_18 = arith.constant dense<0.000000e+00> : vector<1x8x8xf32>
    %56 = tpu.matmul %55, %39, %cst_18 {dimension_numbers = #tpu.dot_dimension_numbers<[2], [1], [1], [2], [0, 0, 0, 1, 1, 2], [0], [0]>} : vector<1x8x8xbf16>, vector<1x8x8xbf16>, vector<1x8x8xf32> -> vector<1x8x8xf32>
    "tpu.trace_stop"() : () -> ()
    %57 = arith.truncf %56 : vector<1x8x8xf32> to vector<1x8x8xbf16>
    %58 = vector.shape_cast %57 : vector<1x8x8xbf16> to vector<8x8xbf16>
    %c0_19 = arith.constant 0 : index
    %c0_20 = arith.constant 0 : index
    %59 = vector.load %arg14[%c0_19, %c0_20] : memref<8x32xbf16, #tpu.memory_space<vmem>>, vector<8x8xbf16>
    tpu.vector_store %arg14[%c0_19, %c0_20], %58 {strides = array<i32>} : memref<8x32xbf16, #tpu.memory_space<vmem>>, vector<8x8xbf16>,
    %60 = vector.extract_strided_slice %29 {offsets = [0, 8], sizes = [8, 8], strides = [1, 1]} : vector<8x96xbf16> to vector<8x8xbf16>
    %61 = vector.shape_cast %60 : vector<8x8xbf16> to vector<1x8x8xbf16>
    %62 = vector.extract_strided_slice %29 {offsets = [0, 40], sizes = [8, 8], strides = [1, 1]} : vector<8x96xbf16> to vector<8x8xbf16>
    %63 = vector.shape_cast %62 : vector<8x8xbf16> to vector<1x8x8xbf16>
    %64 = vector.extract_strided_slice %29 {offsets = [0, 72], sizes = [8, 8], strides = [1, 1]} : vector<8x96xbf16> to vector<8x8xbf16>
    %65 = vector.shape_cast %64 : vector<8x8xbf16> to vector<1x8x8xbf16>
    "tpu.trace_start"() <{level = 10 : i32, message = "bqd,bkd->bqk"}> : () -> ()
    %cst_21 = arith.constant dense<0.000000e+00> : vector<1x8x8xf32>
    %66 = tpu.matmul %61, %63, %cst_21 {dimension_numbers = #tpu.dot_dimension_numbers<[2], [2], [1], [1], [0, 0, 0, 1, 1, 1], [0], [0]>} : vector<1x8x8xbf16>, vector<1x8x8xbf16>, vector<1x8x8xf32> -> vector<1x8x8xf32>
    "tpu.trace_stop"() : () -> ()
    %cst_22 = arith.constant 0.353553385 : f32
    %67 = vector.broadcast %cst_22 : f32 to vector<1x8x8xf32>
    %68 = arith.mulf %66, %67 : vector<1x8x8xf32>
    %cst_23 = arith.constant -1.000000e+30 : f32
    %69 = vector.broadcast %cst_23 : f32 to vector<1x8x8xf32>
    %70 = arith.select %33, %68, %69 : vector<1x8x8xi1>, vector<1x8x8xf32>
    %cst_24 = arith.constant dense<0xFF800000> : vector<1x8xf32>
    %71 = vector.multi_reduction <maximumf>, %70, %cst_24 [2] : vector<1x8x8xf32> to vector<1x8xf32>
    %72 = vector.shape_cast %71 : vector<1x8xf32> to vector<1x8x1xf32>
    %73 = vector.broadcast %72 : vector<1x8x1xf32> to vector<1x8x8xf32>
    %74 = arith.subf %70, %73 : vector<1x8x8xf32>
    %75 = math.exp %74 : vector<1x8x8xf32>
    %cst_25 = arith.constant dense<0.000000e+00> : vector<1x8xf32>
    %76 = vector.multi_reduction <add>, %75, %cst_25 [2] : vector<1x8x8xf32> to vector<1x8xf32>
    %77 = vector.shape_cast %76 : vector<1x8xf32> to vector<1x8x1xf32>
    %78 = tpu.reciprocal %77 {approx = true} : vector<1x8x1xf32> -> vector<1x8x1xf32>
    %79 = vector.broadcast %78 : vector<1x8x1xf32> to vector<1x8x8xf32>
    %80 = arith.mulf %75, %79 : vector<1x8x8xf32>
    %81 = arith.truncf %80 : vector<1x8x8xf32> to vector<1x8x8xbf16>
    "tpu.trace_start"() <{level = 10 : i32, message = "bqk,bkd->bqd"}> : () -> ()
    %cst_26 = arith.constant dense<0.000000e+00> : vector<1x8x8xf32>
    %82 = tpu.matmul %81, %65, %cst_26 {dimension_numbers = #tpu.dot_dimension_numbers<[2], [1], [1], [2], [0, 0, 0, 1, 1, 2], [0], [0]>} : vector<1x8x8xbf16>, vector<1x8x8xbf16>, vector<1x8x8xf32> -> vector<1x8x8xf32>
    "tpu.trace_stop"() : () -> ()
    %83 = arith.truncf %82 : vector<1x8x8xf32> to vector<1x8x8xbf16>
    %84 = vector.shape_cast %83 : vector<1x8x8xbf16> to vector<8x8xbf16>
    %c0_27 = arith.constant 0 : index
    %c8 = arith.constant 8 : index
    %85 = vector.load %arg14[%c0_27, %c8] : memref<8x32xbf16, #tpu.memory_space<vmem>>, vector<8x8xbf16>
    tpu.vector_store %arg14[%c0_27, %c8], %84 {strides = array<i32>} : memref<8x32xbf16, #tpu.memory_space<vmem>>, vector<8x8xbf16>,
    %86 = vector.extract_strided_slice %29 {offsets = [0, 16], sizes = [8, 8], strides = [1, 1]} : vector<8x96xbf16> to vector<8x8xbf16>
    %87 = vector.shape_cast %86 : vector<8x8xbf16> to vector<1x8x8xbf16>
    %88 = vector.extract_strided_slice %29 {offsets = [0, 48], sizes = [8, 8], strides = [1, 1]} : vector<8x96xbf16> to vector<8x8xbf16>
    %89 = vector.shape_cast %88 : vector<8x8xbf16> to vector<1x8x8xbf16>
    %90 = vector.extract_strided_slice %29 {offsets = [0, 80], sizes = [8, 8], strides = [1, 1]} : vector<8x96xbf16> to vector<8x8xbf16>
    %91 = vector.shape_cast %90 : vector<8x8xbf16> to vector<1x8x8xbf16>
    "tpu.trace_start"() <{level = 10 : i32, message = "bqd,bkd->bqk"}> : () -> ()
    %cst_28 = arith.constant dense<0.000000e+00> : vector<1x8x8xf32>
    %92 = tpu.matmul %87, %89, %cst_28 {dimension_numbers = #tpu.dot_dimension_numbers<[2], [2], [1], [1], [0, 0, 0, 1, 1, 1], [0], [0]>} : vector<1x8x8xbf16>, vector<1x8x8xbf16>, vector<1x8x8xf32> -> vector<1x8x8xf32>
    "tpu.trace_stop"() : () -> ()
    %cst_29 = arith.constant 0.353553385 : f32
    %93 = vector.broadcast %cst_29 : f32 to vector<1x8x8xf32>
    %94 = arith.mulf %92, %93 : vector<1x8x8xf32>
    %cst_30 = arith.constant -1.000000e+30 : f32
    %95 = vector.broadcast %cst_30 : f32 to vector<1x8x8xf32>
    %96 = arith.select %33, %94, %95 : vector<1x8x8xi1>, vector<1x8x8xf32>
    %cst_31 = arith.constant dense<0xFF800000> : vector<1x8xf32>
    %97 = vector.multi_reduction <maximumf>, %96, %cst_31 [2] : vector<1x8x8xf32> to vector<1x8xf32>
    %98 = vector.shape_cast %97 : vector<1x8xf32> to vector<1x8x1xf32>
    %99 = vector.broadcast %98 : vector<1x8x1xf32> to vector<1x8x8xf32>
    %100 = arith.subf %96, %99 : vector<1x8x8xf32>
    %101 = math.exp %100 : vector<1x8x8xf32>
    %cst_32 = arith.constant dense<0.000000e+00> : vector<1x8xf32>
    %102 = vector.multi_reduction <add>, %101, %cst_32 [2] : vector<1x8x8xf32> to vector<1x8xf32>
    %103 = vector.shape_cast %102 : vector<1x8xf32> to vector<1x8x1xf32>
    %104 = tpu.reciprocal %103 {approx = true} : vector<1x8x1xf32> -> vector<1x8x1xf32>
    %105 = vector.broadcast %104 : vector<1x8x1xf32> to vector<1x8x8xf32>
    %106 = arith.mulf %101, %105 : vector<1x8x8xf32>
    %107 = arith.truncf %106 : vector<1x8x8xf32> to vector<1x8x8xbf16>
    "tpu.trace_start"() <{level = 10 : i32, message = "bqk,bkd->bqd"}> : () -> ()
    %cst_33 = arith.constant dense<0.000000e+00> : vector<1x8x8xf32>
    %108 = tpu.matmul %107, %91, %cst_33 {dimension_numbers = #tpu.dot_dimension_numbers<[2], [1], [1], [2], [0, 0, 0, 1, 1, 2], [0], [0]>} : vector<1x8x8xbf16>, vector<1x8x8xbf16>, vector<1x8x8xf32> -> vector<1x8x8xf32>
    "tpu.trace_stop"() : () -> ()
    %109 = arith.truncf %108 : vector<1x8x8xf32> to vector<1x8x8xbf16>
    %110 = vector.shape_cast %109 : vector<1x8x8xbf16> to vector<8x8xbf16>
    %c0_34 = arith.constant 0 : index
    %c16 = arith.constant 16 : index
    %111 = vector.load %arg14[%c0_34, %c16] : memref<8x32xbf16, #tpu.memory_space<vmem>>, vector<8x8xbf16>
    tpu.vector_store %arg14[%c0_34, %c16], %110 {strides = array<i32>} : memref<8x32xbf16, #tpu.memory_space<vmem>>, vector<8x8xbf16>,
    %112 = vector.extract_strided_slice %29 {offsets = [0, 24], sizes = [8, 8], strides = [1, 1]} : vector<8x96xbf16> to vector<8x8xbf16>
    %113 = vector.shape_cast %112 : vector<8x8xbf16> to vector<1x8x8xbf16>
    %114 = vector.extract_strided_slice %29 {offsets = [0, 56], sizes = [8, 8], strides = [1, 1]} : vector<8x96xbf16> to vector<8x8xbf16>
    %115 = vector.shape_cast %114 : vector<8x8xbf16> to vector<1x8x8xbf16>
    %116 = vector.extract_strided_slice %29 {offsets = [0, 88], sizes = [8, 8], strides = [1, 1]} : vector<8x96xbf16> to vector<8x8xbf16>
    %117 = vector.shape_cast %116 : vector<8x8xbf16> to vector<1x8x8xbf16>
    "tpu.trace_start"() <{level = 10 : i32, message = "bqd,bkd->bqk"}> : () -> ()
    %cst_35 = arith.constant dense<0.000000e+00> : vector<1x8x8xf32>
    %118 = tpu.matmul %113, %115, %cst_35 {dimension_numbers = #tpu.dot_dimension_numbers<[2], [2], [1], [1], [0, 0, 0, 1, 1, 1], [0], [0]>} : vector<1x8x8xbf16>, vector<1x8x8xbf16>, vector<1x8x8xf32> -> vector<1x8x8xf32>
    "tpu.trace_stop"() : () -> ()
    %cst_36 = arith.constant 0.353553385 : f32
    %119 = vector.broadcast %cst_36 : f32 to vector<1x8x8xf32>
    %120 = arith.mulf %118, %119 : vector<1x8x8xf32>
    %cst_37 = arith.constant -1.000000e+30 : f32
    %121 = vector.broadcast %cst_37 : f32 to vector<1x8x8xf32>
    %122 = arith.select %33, %120, %121 : vector<1x8x8xi1>, vector<1x8x8xf32>
    %cst_38 = arith.constant dense<0xFF800000> : vector<1x8xf32>
    %123 = vector.multi_reduction <maximumf>, %122, %cst_38 [2] : vector<1x8x8xf32> to vector<1x8xf32>
    %124 = vector.shape_cast %123 : vector<1x8xf32> to vector<1x8x1xf32>
    %125 = vector.broadcast %124 : vector<1x8x1xf32> to vector<1x8x8xf32>
    %126 = arith.subf %122, %125 : vector<1x8x8xf32>
    %127 = math.exp %126 : vector<1x8x8xf32>
    %cst_39 = arith.constant dense<0.000000e+00> : vector<1x8xf32>
    %128 = vector.multi_reduction <add>, %127, %cst_39 [2] : vector<1x8x8xf32> to vector<1x8xf32>
    %129 = vector.shape_cast %128 : vector<1x8xf32> to vector<1x8x1xf32>
    %130 = tpu.reciprocal %129 {approx = true} : vector<1x8x1xf32> -> vector<1x8x1xf32>
    %131 = vector.broadcast %130 : vector<1x8x1xf32> to vector<1x8x8xf32>
    %132 = arith.mulf %127, %131 : vector<1x8x8xf32>
    %133 = arith.truncf %132 : vector<1x8x8xf32> to vector<1x8x8xbf16>
    "tpu.trace_start"() <{level = 10 : i32, message = "bqk,bkd->bqd"}> : () -> ()
    %cst_40 = arith.constant dense<0.000000e+00> : vector<1x8x8xf32>
    %134 = tpu.matmul %133, %117, %cst_40 {dimension_numbers = #tpu.dot_dimension_numbers<[2], [1], [1], [2], [0, 0, 0, 1, 1, 2], [0], [0]>} : vector<1x8x8xbf16>, vector<1x8x8xbf16>, vector<1x8x8xf32> -> vector<1x8x8xf32>
    "tpu.trace_stop"() : () -> ()
    %135 = arith.truncf %134 : vector<1x8x8xf32> to vector<1x8x8xbf16>
    %136 = vector.shape_cast %135 : vector<1x8x8xbf16> to vector<8x8xbf16>
    %c0_41 = arith.constant 0 : index
    %c24 = arith.constant 24 : index
    %137 = vector.load %arg14[%c0_41, %c24] : memref<8x32xbf16, #tpu.memory_space<vmem>>, vector<8x8xbf16>
    tpu.vector_store %arg14[%c0_41, %c24], %136 {strides = array<i32>} : memref<8x32xbf16, #tpu.memory_space<vmem>>, vector<8x8xbf16>,
    %c0_42 = arith.constant 0 : index
    %c0_43 = arith.constant 0 : index
    %138 = vector.load %arg14[%c0_42, %c0_43] : memref<8x32xbf16, #tpu.memory_space<vmem>>, vector<8x32xbf16>
    %c0_44 = arith.constant 0 : index
    %c0_45 = arith.constant 0 : index
    %139 = vector.load %arg5[%c0_44, %c0_45] : memref<32x32xbf16, #tpu.memory_space<vmem>>, vector<32x32xbf16>
    %cst_46 = arith.constant dense<0.000000e+00> : vector<8x32xf32>
    %140 = tpu.matmul %138, %139, %cst_46 {dimension_numbers = #tpu.dot_dimension_numbers<[1], [0], [0], [1], [0, 0, 1, 1], [], []>} : vector<8x32xbf16>, vector<32x32xbf16>, vector<8x32xf32> -> vector<8x32xf32>
    %c0_47 = arith.constant 0 : index
    %c0_48 = arith.constant 0 : index
    %141 = vector.load %arg6[%c0_47, %c0_48] : memref<1x32xf32, #tpu.memory_space<vmem>>, vector<1x32xf32>
    %142 = vector.broadcast %141 : vector<1x32xf32> to vector<8x32xf32>
    %143 = arith.addf %140, %142 : vector<8x32xf32>
    %144 = arith.addf %1, %143 : vector<8x32xf32>
    %cst_49 = arith.constant dense<0.000000e+00> : vector<8xf32>
    %145 = vector.multi_reduction <add>, %144, %cst_49 [1] : vector<8x32xf32> to vector<8xf32>
    %146 = vector.shape_cast %145 : vector<8xf32> to vector<8x1xf32>
    %cst_50 = arith.constant 3.200000e+01 : f32
    %147 = vector.broadcast %cst_50 : f32 to vector<8x1xf32>
    %148 = arith.divf %146, %147 : vector<8x1xf32>
    %149 = vector.broadcast %148 : vector<8x1xf32> to vector<8x32xf32>
    %150 = arith.subf %144, %149 : vector<8x32xf32>
    %151 = arith.mulf %150, %150 : vector<8x32xf32>
    %cst_51 = arith.constant dense<0.000000e+00> : vector<8xf32>
    %152 = vector.multi_reduction <add>, %151, %cst_51 [1] : vector<8x32xf32> to vector<8xf32>
    %153 = vector.shape_cast %152 : vector<8xf32> to vector<8x1xf32>
    %cst_52 = arith.constant 3.200000e+01 : f32
    %154 = vector.broadcast %cst_52 : f32 to vector<8x1xf32>
    %155 = arith.divf %153, %154 : vector<8x1xf32>
    %156 = vector.broadcast %148 : vector<8x1xf32> to vector<8x32xf32>
    %157 = arith.subf %144, %156 : vector<8x32xf32>
    %cst_53 = arith.constant 9.99999974E-6 : f32
    %158 = vector.broadcast %cst_53 : f32 to vector<8x1xf32>
    %159 = arith.addf %155, %158 : vector<8x1xf32>
    %160 = math.rsqrt %159 : vector<8x1xf32>
    %161 = vector.broadcast %160 : vector<8x1xf32> to vector<8x32xf32>
    %162 = arith.mulf %157, %161 : vector<8x32xf32>
    %c0_54 = arith.constant 0 : index
    %c0_55 = arith.constant 0 : index
    %163 = vector.load %arg7[%c0_54, %c0_55] : memref<1x32xf32, #tpu.memory_space<vmem>>, vector<1x32xf32>
    %164 = vector.broadcast %163 : vector<1x32xf32> to vector<8x32xf32>
    %165 = arith.mulf %162, %164 : vector<8x32xf32>
    %c0_56 = arith.constant 0 : index
    %c0_57 = arith.constant 0 : index
    %166 = vector.load %arg8[%c0_56, %c0_57] : memref<1x32xf32, #tpu.memory_space<vmem>>, vector<1x32xf32>
    %167 = vector.broadcast %166 : vector<1x32xf32> to vector<8x32xf32>
    %168 = arith.addf %165, %167 : vector<8x32xf32>
    %169 = arith.truncf %168 : vector<8x32xf32> to vector<8x32xbf16>
    %c0_58 = arith.constant 0 : index
    %c0_59 = arith.constant 0 : index
    %170 = vector.load %arg9[%c0_58, %c0_59] : memref<32x128xbf16, #tpu.memory_space<vmem>>, vector<32x128xbf16>
    %cst_60 = arith.constant dense<0.000000e+00> : vector<8x128xf32>
    %171 = tpu.matmul %169, %170, %cst_60 {dimension_numbers = #tpu.dot_dimension_numbers<[1], [0], [0], [1], [0, 0, 1, 1], [], []>} : vector<8x32xbf16>, vector<32x128xbf16>, vector<8x128xf32> -> vector<8x128xf32>
    %c0_61 = arith.constant 0 : index
    %c0_62 = arith.constant 0 : index
    %172 = vector.load %arg10[%c0_61, %c0_62] : memref<1x128xf32, #tpu.memory_space<vmem>>, vector<1x128xf32>
    %173 = vector.broadcast %172 : vector<1x128xf32> to vector<8x128xf32>
    %174 = arith.addf %171, %173 : vector<8x128xf32>
    %cst_63 = arith.constant 0.000000e+00 : f32
    %175 = vector.broadcast %cst_63 : f32 to vector<8x128xf32>
    %176 = arith.maximumf %174, %175 : vector<8x128xf32>
    %177 = arith.truncf %176 : vector<8x128xf32> to vector<8x128xbf16>
    %c0_64 = arith.constant 0 : index
    %c0_65 = arith.constant 0 : index
    %178 = vector.load %arg11[%c0_64, %c0_65] : memref<128x32xbf16, #tpu.memory_space<vmem>>, vector<128x32xbf16>
    %cst_66 = arith.constant dense<0.000000e+00> : vector<8x32xf32>
    %179 = tpu.matmul %177, %178, %cst_66 {dimension_numbers = #tpu.dot_dimension_numbers<[1], [0], [0], [1], [0, 0, 1, 1], [], []>} : vector<8x128xbf16>, vector<128x32xbf16>, vector<8x32xf32> -> vector<8x32xf32>
    %c0_67 = arith.constant 0 : index
    %c0_68 = arith.constant 0 : index
    %180 = vector.load %arg12[%c0_67, %c0_68] : memref<1x32xf32, #tpu.memory_space<vmem>>, vector<1x32xf32>
    %181 = vector.broadcast %180 : vector<1x32xf32> to vector<8x32xf32>
    %182 = arith.addf %179, %181 : vector<8x32xf32>
    %183 = arith.addf %144, %182 : vector<8x32xf32>
    %184 = vector.shape_cast %183 : vector<8x32xf32> to vector<1x8x32xf32>
    %c0_69 = arith.constant 0 : index
    %c0_70 = arith.constant 0 : index
    %c0_71 = arith.constant 0 : index
    %185 = vector.load %arg13[%c0_69, %c0_70, %c0_71] : memref<1x8x32xf32, #tpu.memory_space<vmem>>, vector<1x8x32xf32>
    tpu.vector_store %arg13[%c0_69, %c0_70, %c0_71], %184 {strides = array<i32>} : memref<1x8x32xf32, #tpu.memory_space<vmem>>, vector<1x8x32xf32>,
    return
  }
  func.func @transform_0(%arg0: i32) -> (i32, i32, i32) {
    %c0_i32 = arith.constant 0 : i32
    %c0_i32_0 = arith.constant 0 : i32
    %c0_i32_1 = arith.constant 0 : i32
    return %arg0, %c0_i32, %c0_i32_0 : i32, i32, i32
  }
  func.func @transform_1(%arg0: i32) -> (i32, i32) {
    %c0_i32 = arith.constant 0 : i32
    %c0_i32_0 = arith.constant 0 : i32
    %c0_i32_1 = arith.constant 0 : i32
    return %c0_i32, %c0_i32_0 : i32, i32
  }
  func.func @transform_2(%arg0: i32) -> (i32, i32) {
    %c0_i32 = arith.constant 0 : i32
    %c0_i32_0 = arith.constant 0 : i32
    %c0_i32_1 = arith.constant 0 : i32
    return %c0_i32, %c0_i32_0 : i32, i32
  }
  func.func @transform_3(%arg0: i32) -> (i32, i32) {
    %c0_i32 = arith.constant 0 : i32
    %c0_i32_0 = arith.constant 0 : i32
    %c0_i32_1 = arith.constant 0 : i32
    return %c0_i32, %c0_i32_0 : i32, i32
  }
  func.func @transform_4(%arg0: i32) -> (i32, i32) {
    %c0_i32 = arith.constant 0 : i32
    %c0_i32_0 = arith.constant 0 : i32
    %c0_i32_1 = arith.constant 0 : i32
    return %c0_i32, %c0_i32_0 : i32, i32
  }
  func.func @transform_5(%arg0: i32) -> (i32, i32) {
    %c0_i32 = arith.constant 0 : i32
    %c0_i32_0 = arith.constant 0 : i32
    %c0_i32_1 = arith.constant 0 : i32
    return %c0_i32, %c0_i32_0 : i32, i32
  }
  func.func @transform_6(%arg0: i32) -> (i32, i32) {
    %c0_i32 = arith.constant 0 : i32
    %c0_i32_0 = arith.constant 0 : i32
    %c0_i32_1 = arith.constant 0 : i32
    return %c0_i32, %c0_i32_0 : i32, i32
  }
  func.func @transform_7(%arg0: i32) -> (i32, i32) {
    %c0_i32 = arith.constant 0 : i32
    %c0_i32_0 = arith.constant 0 : i32
    %c0_i32_1 = arith.constant 0 : i32
    return %c0_i32, %c0_i32_0 : i32, i32
  }
  func.func @transform_8(%arg0: i32) -> (i32, i32) {
    %c0_i32 = arith.constant 0 : i32
    %c0_i32_0 = arith.constant 0 : i32
    %c0_i32_1 = arith.constant 0 : i32
    return %c0_i32, %c0_i32_0 : i32, i32
  }
  func.func @transform_9(%arg0: i32) -> (i32, i32) {
    %c0_i32 = arith.constant 0 : i32
    %c0_i32_0 = arith.constant 0 : i32
    %c0_i32_1 = arith.constant 0 : i32
    return %c0_i32, %c0_i32_0 : i32, i32
  }
  func.func @transform_10(%arg0: i32) -> (i32, i32) {
    %c0_i32 = arith.constant 0 : i32
    %c0_i32_0 = arith.constant 0 : i32
    %c0_i32_1 = arith.constant 0 : i32
    return %c0_i32, %c0_i32_0 : i32, i32
  }
  func.func @transform_11(%arg0: i32) -> (i32, i32) {
    %c0_i32 = arith.constant 0 : i32
    %c0_i32_0 = arith.constant 0 : i32
    %c0_i32_1 = arith.constant 0 : i32
    return %c0_i32, %c0_i32_0 : i32, i32
  }
  func.func @transform_12(%arg0: i32) -> (i32, i32, i32) {
    %c0_i32 = arith.constant 0 : i32
    %c0_i32_0 = arith.constant 0 : i32
    %c0_i32_1 = arith.constant 0 : i32
    return %arg0, %c0_i32, %c0_i32_0 : i32, i32, i32
  }
}

</mosaic_0001>

<llo_original>
// kernel: tpu_custom_call.1
$region0: #{tpu_custom_call.1}
  #allocation0 [shape = 'u32[]', space=smem, size = 0x4, offset = 0x4, fixed_abs, tag = 'smem constant byte address 0x4 - core index']
  #allocation1 [shape = 'u32[144,128]{1,0:T(1,128)}', space=vmem, size = 0x12000, scoped, tag = 'internal scratch']
  #allocation2 [shape = 'bf16[8,32]{1,0:T(8,128)(2,1)}', space=vmem, size = 0x800, scoped, tag = 'scratch operand']
  %s0 = inlined_call_operand.vmem [shape: f32[2,8,32], index: 0, kind: input, shape index: {}]
  %s1 = inlined_call_operand.vmem [shape: f32[1,32], index: 1, kind: input, shape index: {}]
  %s2 = inlined_call_operand.vmem [shape: f32[1,32], index: 2, kind: input, shape index: {}]
  %s3 = inlined_call_operand.vmem [shape: bf16[32,96], index: 3, kind: input, shape index: {}]
  %s4 = inlined_call_operand.vmem [shape: bf16[32,32], index: 4, kind: input, shape index: {}]
  %s5 = inlined_call_operand.vmem [shape: f32[1,32], index: 5, kind: input, shape index: {}]
  %s6 = inlined_call_operand.vmem [shape: f32[1,32], index: 6, kind: input, shape index: {}]
  %s7 = inlined_call_operand.vmem [shape: f32[1,32], index: 7, kind: input, shape index: {}]
  %s8 = inlined_call_operand.vmem [shape: bf16[32,128], index: 8, kind: input, shape index: {}]
  %s9 = inlined_call_operand.vmem [shape: f32[1,128], index: 9, kind: input, shape index: {}]
  %s10 = inlined_call_operand.vmem [shape: bf16[128,32], index: 10, kind: input, shape index: {}]
  %s11 = inlined_call_operand.vmem [shape: f32[1,32], index: 11, kind: input, shape index: {}]
  %s12 = inlined_call_operand.hbm [shape: f32[2,8,32], index: 12, kind: output, shape index: {}]
  %s13 = sld [smem:[#allocation0]]
  $region81: #{tpu_custom_call.1} parent=0
    _
  %s15 = ssub.s32 1, %s13
  %s16 = scalar_select 0, %s15, %s13
  $region1: #{tpu_custom_call.1} parent=0
    #allocation3 [shape = 'u8[8192]{0}', space=vmem, size = 0x2000, scoped, tag = 'output window, operand 0']
    #allocation4 [shape = 's32[2]{0}', space=sflag, size = 0x8, scoped, tag = 'scoped memory for tpu_custom_call.1']
    %17 = vsyncpa [#allocation4], 0
    %s18 = scalar_lea.sflag [#allocation4], 1
    %19 = vsyncpa %s18, 0
    loop: start=0, step=1, limit=4
    $region2: #{tpu_custom_call.1} parent=1 // loop_pre_header
      _
    $region3: #{tpu_custom_call.1} parent=1 // loop_header
      %s21 = sphi 0, %s25
      %p22 = scmp.ge.s32.totalorder %s21, 4
      %s31 = sphi 0, %s33
      %s34 = sphi 0, %s31
      %s35 = sphi 0, %s34
      %s51 = sphi 0, %s35
      %s55 = sphi 0, %s55
      %s57 = sphi 0, %s55
      %s58 = sphi 0, %s57
      %s72 = sphi 0, %s58
      %s76 = sphi 0, %s76
      %s78 = sphi 0, %s76
      %s79 = sphi 0, %s78
      %s93 = sphi 0, %s79
      %s97 = sphi 0, %s97
      %s99 = sphi 0, %s97
      %s100 = sphi 0, %s99
      %s114 = sphi 0, %s100
      %s118 = sphi 0, %s118
      %s120 = sphi 0, %s118
      %s121 = sphi 0, %s120
      %s135 = sphi 0, %s121
      %s139 = sphi 0, %s139
      %s141 = sphi 0, %s139
      %s142 = sphi 0, %s141
      %s156 = sphi 0, %s142
      %s160 = sphi 0, %s160
      %s162 = sphi 0, %s160
      %s163 = sphi 0, %s162
      %s177 = sphi 0, %s163
      %s181 = sphi 0, %s181
      %s183 = sphi 0, %s181
      %s184 = sphi 0, %s183
      %s198 = sphi 0, %s184
      %s202 = sphi 0, %s202
      %s204 = sphi 0, %s202
      %s205 = sphi 0, %s204
      %s219 = sphi 0, %s205
      %s223 = sphi 0, %s223
      %s225 = sphi 0, %s223
      %s226 = sphi 0, %s225
      %s240 = sphi 0, %s226
      %s244 = sphi 0, %s244
      %s246 = sphi 0, %s244
      %s247 = sphi 0, %s246
      %s261 = sphi 0, %s247
      %s265 = sphi 0, %s265
      %s267 = sphi 0, %s265
      %s268 = sphi 0, %s267
      %s282 = sphi 0, %s268
      %s288 = sphi 0, %s290
      %s291 = sphi 0, %s288
      %s292 = sphi 0, %s291
      %s308 = sphi 0, %s292
    $region4: #{tpu_custom_call.1} parent=1 // loop_header_branch
      %24 = sbr.rel (%p22) target = $region8
    $region5: #{tpu_custom_call.1} parent=1 // loop_body
      %s26 = ssub.s32 %s21, 1
      %s27 = ssub.s32 %s21, 2
      %s28 = sadd.s32 %s21, 1
      %s29 = ssub.s32 %s21, %s28
      %p30 = scmp.eq.s32.totalorder %s29, 0
      %s32 = sadd.s32 %s31, 1
      %s33 = scalar_select %p30, %s31, %s32
      %p36 = pneg %p30
      %p37 = scmp.eq.s32.totalorder %s21, 1
      %p38 = por %p36, %p37
      %p39 = scmp.ne.s32.totalorder %s31, %s34
      %p40 = scmp.eq.s32.totalorder %s21, 0
      %p41 = por %p39, %p40
      %p42 = scmp.ne.s32.totalorder %s31, %s34
      %p43 = scmp.eq.s32.totalorder %s26, 1
      %p44 = por %p42, %p43
      %p45 = scmp.ne.s32.totalorder %s34, %s35
      %p46 = scmp.eq.s32.totalorder %s26, 0
      %p47 = por %p45, %p46
      %p48 = scmp.ne.s32.totalorder %s34, %s35
      %p49 = scmp.eq.s32.totalorder %s27, 1
      %p50 = por %p48, %p49
      %p52 = scmp.ne.s32.totalorder %s35, %s51
      %p53 = scmp.eq.s32.totalorder %s27, 0
      %p54 = por %p52, %p53
      %s56 = sadd.s32 %s55, 1
      %p59 = scmp.eq.s32.totalorder %s21, 1
      %p60 = scmp.ne.s32.totalorder %s55, %s57
      %p61 = scmp.eq.s32.totalorder %s21, 0
      %p62 = por %p60, %p61
      %p63 = scmp.ne.s32.totalorder %s55, %s57
      %p64 = scmp.eq.s32.totalorder %s26, 1
      %p65 = por %p63, %p64
      %p66 = scmp.ne.s32.totalorder %s57, %s58
      %p67 = scmp.eq.s32.totalorder %s26, 0
      %p68 = por %p66, %p67
      %p69 = scmp.ne.s32.totalorder %s57, %s58
      %p70 = scmp.eq.s32.totalorder %s27, 1
      %p71 = por %p69, %p70
      %p73 = scmp.ne.s32.totalorder %s58, %s72
      %p74 = scmp.eq.s32.totalorder %s27, 0
      %p75 = por %p73, %p74
      %s77 = sadd.s32 %s76, 1
      %p80 = scmp.eq.s32.totalorder %s21, 1
      %p81 = scmp.ne.s32.totalorder %s76, %s78
      %p82 = scmp.eq.s32.totalorder %s21, 0
      %p83 = por %p81, %p82
      %p84 = scmp.ne.s32.totalorder %s76, %s78
      %p85 = scmp.eq.s32.totalorder %s26, 1
      %p86 = por %p84, %p85
      %p87 = scmp.ne.s32.totalorder %s78, %s79
      %p88 = scmp.eq.s32.totalorder %s26, 0
      %p89 = por %p87, %p88
      %p90 = scmp.ne.s32.totalorder %s78, %s79
      %p91 = scmp.eq.s32.totalorder %s27, 1
      %p92 = por %p90, %p91
      %p94 = scmp.ne.s32.totalorder %s79, %s93
      %p95 = scmp.eq.s32.totalorder %s27, 0
      %p96 = por %p94, %p95
      %s98 = sadd.s32 %s97, 1
      %p101 = scmp.eq.s32.totalorder %s21, 1
      %p102 = scmp.ne.s32.totalorder %s97, %s99
      %p103 = scmp.eq.s32.totalorder %s21, 0
      %p104 = por %p102, %p103
      %p105 = scmp.ne.s32.totalorder %s97, %s99
      %p106 = scmp.eq.s32.totalorder %s26, 1
      %p107 = por %p105, %p106
      %p108 = scmp.ne.s32.totalorder %s99, %s100
      %p109 = scmp.eq.s32.totalorder %s26, 0
      %p110 = por %p108, %p109
      %p111 = scmp.ne.s32.totalorder %s99, %s100
      %p112 = scmp.eq.s32.totalorder %s27, 1
      %p113 = por %p111, %p112
      %p115 = scmp.ne.s32.totalorder %s100, %s114
      %p116 = scmp.eq.s32.totalorder %s27, 0
      %p117 = por %p115, %p116
      %s119 = sadd.s32 %s118, 1
      %p122 = scmp.eq.s32.totalorder %s21, 1
      %p123 = scmp.ne.s32.totalorder %s118, %s120
      %p124 = scmp.eq.s32.totalorder %s21, 0
      %p125 = por %p123, %p124
      %p126 = scmp.ne.s32.totalorder %s118, %s120
      %p127 = scmp.eq.s32.totalorder %s26, 1
      %p128 = por %p126, %p127
      %p129 = scmp.ne.s32.totalorder %s120, %s121
      %p130 = scmp.eq.s32.totalorder %s26, 0
      %p131 = por %p129, %p130
      %p132 = scmp.ne.s32.totalorder %s120, %s121
      %p133 = scmp.eq.s32.totalorder %s27, 1
      %p134 = por %p132, %p133
      %p136 = scmp.ne.s32.totalorder %s121, %s135
      %p137 = scmp.eq.s32.totalorder %s27, 0
      %p138 = por %p136, %p137
      %s140 = sadd.s32 %s139, 1
      %p143 = scmp.eq.s32.totalorder %s21, 1
      %p144 = scmp.ne.s32.totalorder %s139, %s141
      %p145 = scmp.eq.s32.totalorder %s21, 0
      %p146 = por %p144, %p145
      %p147 = scmp.ne.s32.totalorder %s139, %s141
      %p148 = scmp.eq.s32.totalorder %s26, 1
      %p149 = por %p147, %p148
      %p150 = scmp.ne.s32.totalorder %s141, %s142
      %p151 = scmp.eq.s32.totalorder %s26, 0
      %p152 = por %p150, %p151
      %p153 = scmp.ne.s32.totalorder %s141, %s142
      %p154 = scmp.eq.s32.totalorder %s27, 1
      %p155 = por %p153, %p154
      %p157 = scmp.ne.s32.totalorder %s142, %s156
      %p158 = scmp.eq.s32.totalorder %s27, 0
      %p159 = por %p157, %p158
      %s161 = sadd.s32 %s160, 1
      %p164 = scmp.eq.s32.totalorder %s21, 1
      %p165 = scmp.ne.s32.totalorder %s160, %s162
      %p166 = scmp.eq.s32.totalorder %s21, 0
      %p167 = por %p165, %p166
      %p168 = scmp.ne.s32.totalorder %s160, %s162
      %p169 = scmp.eq.s32.totalorder %s26, 1
      %p170 = por %p168, %p169
      %p171 = scmp.ne.s32.totalorder %s162, %s163
      %p172 = scmp.eq.s32.totalorder %s26, 0
      %p173 = por %p171, %p172
      %p174 = scmp.ne.s32.totalorder %s162, %s163
      %p175 = scmp.eq.s32.totalorder %s27, 1
      %p176 = por %p174, %p175
      %p178 = scmp.ne.s32.totalorder %s163, %s177
      %p179 = scmp.eq.s32.totalorder %s27, 0
      %p180 = por %p178, %p179
      %s182 = sadd.s32 %s181, 1
      %p185 = scmp.eq.s32.totalorder %s21, 1
      %p186 = scmp.ne.s32.totalorder %s181, %s183
      %p187 = scmp.eq.s32.totalorder %s21, 0
      %p188 = por %p186, %p187
      %p189 = scmp.ne.s32.totalorder %s181, %s183
      %p190 = scmp.eq.s32.totalorder %s26, 1
      %p191 = por %p189, %p190
      %p192 = scmp.ne.s32.totalorder %s183, %s184
      %p193 = scmp.eq.s32.totalorder %s26, 0
      %p194 = por %p192, %p193
      %p195 = scmp.ne.s32.totalorder %s183, %s184
      %p196 = scmp.eq.s32.totalorder %s27, 1
      %p197 = por %p195, %p196
      %p199 = scmp.ne.s32.totalorder %s184, %s198
      %p200 = scmp.eq.s32.totalorder %s27, 0
      %p201 = por %p199, %p200
      %s203 = sadd.s32 %s202, 1
      %p206 = scmp.eq.s32.totalorder %s21, 1
      %p207 = scmp.ne.s32.totalorder %s202, %s204
      %p208 = scmp.eq.s32.totalorder %s21, 0
      %p209 = por %p207, %p208
      %p210 = scmp.ne.s32.totalorder %s202, %s204
      %p211 = scmp.eq.s32.totalorder %s26, 1
      %p212 = por %p210, %p211
      %p213 = scmp.ne.s32.totalorder %s204, %s205
      %p214 = scmp.eq.s32.totalorder %s26, 0
      %p215 = por %p213, %p214
      %p216 = scmp.ne.s32.totalorder %s204, %s205
      %p217 = scmp.eq.s32.totalorder %s27, 1
      %p218 = por %p216, %p217
      %p220 = scmp.ne.s32.totalorder %s205, %s219
      %p221 = scmp.eq.s32.totalorder %s27, 0
      %p222 = por %p220, %p221
      %s224 = sadd.s32 %s223, 1
      %p227 = scmp.eq.s32.totalorder %s21, 1
      %p228 = scmp.ne.s32.totalorder %s223, %s225
      %p229 = scmp.eq.s32.totalorder %s21, 0
      %p230 = por %p228, %p229
      %p231 = scmp.ne.s32.totalorder %s223, %s225
      %p232 = scmp.eq.s32.totalorder %s26, 1
      %p233 = por %p231, %p232
      %p234 = scmp.ne.s32.totalorder %s225, %s226
      %p235 = scmp.eq.s32.totalorder %s26, 0
      %p236 = por %p234, %p235
      %p237 = scmp.ne.s32.totalorder %s225, %s226
      %p238 = scmp.eq.s32.totalorder %s27, 1
      %p239 = por %p237, %p238
      %p241 = scmp.ne.s32.totalorder %s226, %s240
      %p242 = scmp.eq.s32.totalorder %s27, 0
      %p243 = por %p241, %p242
      %s245 = sadd.s32 %s244, 1
      %p248 = scmp.eq.s32.totalorder %s21, 1
      %p249 = scmp.ne.s32.totalorder %s244, %s246
      %p250 = scmp.eq.s32.totalorder %s21, 0
      %p251 = por %p249, %p250
      %p252 = scmp.ne.s32.totalorder %s244, %s246
      %p253 = scmp.eq.s32.totalorder %s26, 1
      %p254 = por %p252, %p253
      %p255 = scmp.ne.s32.totalorder %s246, %s247
      %p256 = scmp.eq.s32.totalorder %s26, 0
      %p257 = por %p255, %p256
      %p258 = scmp.ne.s32.totalorder %s246, %s247
      %p259 = scmp.eq.s32.totalorder %s27, 1
      %p260 = por %p258, %p259
      %p262 = scmp.ne.s32.totalorder %s247, %s261
      %p263 = scmp.eq.s32.totalorder %s27, 0
      %p264 = por %p262, %p263
      %s266 = sadd.s32 %s265, 1
      %p269 = scmp.eq.s32.totalorder %s21, 1
      %p270 = scmp.ne.s32.totalorder %s265, %s267
      %p271 = scmp.eq.s32.totalorder %s21, 0
      %p272 = por %p270, %p271
      %p273 = scmp.ne.s32.totalorder %s265, %s267
      %p274 = scmp.eq.s32.totalorder %s26, 1
      %p275 = por %p273, %p274
      %p276 = scmp.ne.s32.totalorder %s267, %s268
      %p277 = scmp.eq.s32.totalorder %s26, 0
      %p278 = por %p276, %p277
      %p279 = scmp.ne.s32.totalorder %s267, %s268
      %p280 = scmp.eq.s32.totalorder %s27, 1
      %p281 = por %p279, %p280
      %p283 = scmp.ne.s32.totalorder %s268, %s282
      %p284 = scmp.eq.s32.totalorder %s27, 0
      %p285 = por %p283, %p284
      %s286 = ssub.s32 %s21, %s28
      %p287 = scmp.eq.s32.totalorder %s286, 0
      %s289 = sadd.s32 %s288, 1
      %s290 = scalar_select %p287, %s288, %s289
      %p293 = pneg %p287
      %p294 = scmp.eq.s32.totalorder %s21, 1
      %p295 = por %p293, %p294
      %p296 = scmp.ne.s32.totalorder %s288, %s291
      %p297 = scmp.eq.s32.totalorder %s21, 0
      %p298 = por %p296, %p297
      %p299 = scmp.ne.s32.totalorder %s288, %s291
      %p300 = scmp.eq.s32.totalorder %s26, 1
      %p301 = por %p299, %p300
      %p302 = scmp.ne.s32.totalorder %s291, %s292
      %p303 = scmp.eq.s32.totalorder %s26, 0
      %p304 = por %p302, %p303
      %p305 = scmp.ne.s32.totalorder %s291, %s292
      %p306 = scmp.eq.s32.totalorder %s27, 1
      %p307 = por %p305, %p306
      %p309 = scmp.ne.s32.totalorder %s292, %s308
      %p310 = scmp.eq.s32.totalorder %s27, 0
      %p311 = por %p309, %p310
      %p312 = scmp.le.s32.totalorder 1, %s21
      %p313 = scmp.lt.s32.totalorder %s21, 3
      %p314 = pnand %p312, %p313
      %p315 = pneg %p314
      // Predicated region
      $region9: #{tpu_custom_call.1} parent=5 // pred_check
        _
      $region10: #{tpu_custom_call.1} parent=5 // pred_check_branch
        %317 = sbr.rel (%p314) target = $region12
      $region11: #{tpu_custom_call.1} parent=5 // pred_region
        %s318 = ssub.s32 %s21, 1
        // Predicated region
        $region13: #{tpu_custom_call.1} parent=11 // pred_check
          %p319 = pneg %p68
        $region14: #{tpu_custom_call.1} parent=11 // pred_check_branch
          %321 = sbr.rel (%p319) target = $region16
        $region15: #{tpu_custom_call.1} parent=11 // pred_region
          _
        $region16: #{tpu_custom_call.1} parent=11 // pred_fallthru
          _
        // Predicated region
        $region17: #{tpu_custom_call.1} parent=11 // pred_check
          %p322 = pneg %p89
        $region18: #{tpu_custom_call.1} parent=11 // pred_check_branch
          %324 = sbr.rel (%p322) target = $region20
        $region19: #{tpu_custom_call.1} parent=11 // pred_region
          _
        $region20: #{tpu_custom_call.1} parent=11 // pred_fallthru
          _
        // Predicated region
        $region21: #{tpu_custom_call.1} parent=11 // pred_check
          %p325 = pneg %p110
        $region22: #{tpu_custom_call.1} parent=11 // pred_check_branch
          %327 = sbr.rel (%p325) target = $region24
        $region23: #{tpu_custom_call.1} parent=11 // pred_region
          _
        $region24: #{tpu_custom_call.1} parent=11 // pred_fallthru
          _
        // Predicated region
        $region25: #{tpu_custom_call.1} parent=11 // pred_check
          %p328 = pneg %p131
        $region26: #{tpu_custom_call.1} parent=11 // pred_check_branch
          %330 = sbr.rel (%p328) target = $region28
        $region27: #{tpu_custom_call.1} parent=11 // pred_region
          _
        $region28: #{tpu_custom_call.1} parent=11 // pred_fallthru
          _
        // Predicated region
        $region29: #{tpu_custom_call.1} parent=11 // pred_check
          %p331 = pneg %p152
        $region30: #{tpu_custom_call.1} parent=11 // pred_check_branch
          %333 = sbr.rel (%p331) target = $region32
        $region31: #{tpu_custom_call.1} parent=11 // pred_region
          _
        $region32: #{tpu_custom_call.1} parent=11 // pred_fallthru
          _
        // Predicated region
        $region33: #{tpu_custom_call.1} parent=11 // pred_check
          %p334 = pneg %p173
        $region34: #{tpu_custom_call.1} parent=11 // pred_check_branch
          %336 = sbr.rel (%p334) target = $region36
        $region35: #{tpu_custom_call.1} parent=11 // pred_region
          _
        $region36: #{tpu_custom_call.1} parent=11 // pred_fallthru
          _
        // Predicated region
        $region37: #{tpu_custom_call.1} parent=11 // pred_check
          %p337 = pneg %p194
        $region38: #{tpu_custom_call.1} parent=11 // pred_check_branch
          %339 = sbr.rel (%p337) target = $region40
        $region39: #{tpu_custom_call.1} parent=11 // pred_region
          _
        $region40: #{tpu_custom_call.1} parent=11 // pred_fallthru
          _
        // Predicated region
        $region41: #{tpu_custom_call.1} parent=11 // pred_check
          %p340 = pneg %p215
        $region42: #{tpu_custom_call.1} parent=11 // pred_check_branch
          %342 = sbr.rel (%p340) target = $region44
        $region43: #{tpu_custom_call.1} parent=11 // pred_region
          _
        $region44: #{tpu_custom_call.1} parent=11 // pred_fallthru
          _
        // Predicated region
        $region45: #{tpu_custom_call.1} parent=11 // pred_check
          %p343 = pneg %p236
        $region46: #{tpu_custom_call.1} parent=11 // pred_check_branch
          %345 = sbr.rel (%p343) target = $region48
        $region47: #{tpu_custom_call.1} parent=11 // pred_region
          _
        $region48: #{tpu_custom_call.1} parent=11 // pred_fallthru
          _
        // Predicated region
        $region49: #{tpu_custom_call.1} parent=11 // pred_check
          %p346 = pneg %p257
        $region50: #{tpu_custom_call.1} parent=11 // pred_check_branch
          %348 = sbr.rel (%p346) target = $region52
        $region51: #{tpu_custom_call.1} parent=11 // pred_region
          _
        $region52: #{tpu_custom_call.1} parent=11 // pred_fallthru
          _
        // Predicated region
        $region53: #{tpu_custom_call.1} parent=11 // pred_check
          %p349 = pneg %p278
        $region54: #{tpu_custom_call.1} parent=11 // pred_check_branch
          %351 = sbr.rel (%p349) target = $region56
        $region55: #{tpu_custom_call.1} parent=11 // pred_region
          _
        $region56: #{tpu_custom_call.1} parent=11 // pred_fallthru
          _
      $region12: #{tpu_custom_call.1} parent=5 // pred_fallthru
        _
      %p352 = scmp.lt.s32.totalorder %s21, 2
      // Predicated region
      $region57: #{tpu_custom_call.1} parent=5 // pred_check
        %p353 = pneg %p352
      $region58: #{tpu_custom_call.1} parent=5 // pred_check_branch
        %355 = sbr.rel (%p353) target = $region60
      $region59: #{tpu_custom_call.1} parent=5 // pred_region
        // Predicated region
        $region61: #{tpu_custom_call.1} parent=59 // pred_check
          %p356 = pneg %p41
        $region62: #{tpu_custom_call.1} parent=59 // pred_check_branch
          %358 = sbr.rel (%p356) target = $region64
        $region63: #{tpu_custom_call.1} parent=59 // pred_region
          %p359 = scmp.lt.s32.totalorder %s21, 1
          %s360 = scalar_select %p359, %s21, 1
          %s361 = smul.addr %s360, 8
          %s362 = scalar_lea.vmem %s0, %s361
        $region64: #{tpu_custom_call.1} parent=59 // pred_fallthru
          _
      $region60: #{tpu_custom_call.1} parent=5 // pred_fallthru
        _
      %p363 = scmp.le.s32.totalorder 1, %s21
      %p364 = scmp.lt.s32.totalorder %s21, 3
      %p365 = pnand %p363, %p364
      %p366 = pneg %p365
      // Predicated region
      $region65: #{tpu_custom_call.1} parent=5 // pred_check
        _
      $region66: #{tpu_custom_call.1} parent=5 // pred_check_branch
        %368 = sbr.rel (%p365) target = $region68
      $region67: #{tpu_custom_call.1} parent=5 // pred_region
        %s369 = ssub.s32 %s21, 1
        %p370 = scmp.lt.s32.totalorder %s26, 1
        %s371 = scalar_select %p370, %s26, 1
        %s372 = smul.addr %s371, 8
        %s373 = scalar_lea.vmem %s0, %s372
        %p374 = pneg %p47
        %p375 = pneg %p44
        %p376 = pneg %p68
        %p377 = pneg %p65
        %p378 = pneg %p89
        %p379 = pneg %p86
        %p380 = pneg %p110
        %p381 = pneg %p107
        %p382 = pneg %p131
        %p383 = pneg %p128
        %p384 = pneg %p152
        %p385 = pneg %p149
        %p386 = pneg %p173
        %p387 = pneg %p170
        %p388 = pneg %p194
        %p389 = pneg %p191
        %p390 = pneg %p215
        %p391 = pneg %p212
        %p392 = pneg %p236
        %p393 = pneg %p233
        %p394 = pneg %p257
        %p395 = pneg %p254
        %p396 = pneg %p278
        %p397 = pneg %p275
        %p398 = pneg %p304
        %p399 = pneg %p301
        %s400 = sand.u32 %s291, 1
        %s401 = scalar_lea.sflag [#allocation4], %s400
        %s402 = sand.u32 %s291, 1
        %s403 = smul.addr %s402, 8
        %s404 = scalar_lea.vmem [#allocation3], %s403
        %p405 = scmp.lt.s32.totalorder %s26, 1
        %s406 = scalar_select %p405, %s26, 1
        %s407 = smul.addr %s406, 8
        %s408 = scalar_lea.vmem %s0, %s407
        %v410 = vld [vmem:[%s408] sm:$0xff]
        %vm411 = vcmask 261120
        %v412 = vsel %vm411, %v410, 0.0
        %413 = vadd.xlane.f32.xlu0 %v412
        %v414 = vpop.xlane.xlu0 %413
        %v415 = vrcp.pop 32.0
        %v416 = vmul.f32 %v414, %v415
        %v417 = vsub.f32 %v410, %v416
        %v418 = vmul.f32 %v417, %v417
        %v419 = vsel %vm411, %v418, 0.0
        %420 = vadd.xlane.f32.xlu0 %v419
        %v421 = vpop.xlane.xlu0 %420
        %v422 = vmul.f32 %v421, %v415
        %v423 = vadd.f32 %v422, 1e-05
        %v424 = vrsqrt.pop %v423
        %v425 = vmul.f32 %v417, %v424
        %v426 = vld [vmem:[%s1] sm:$0x1]
        %v428 = vlaneseq
        %v429 = vshrl.u32 %v428, 7
        %v430 = vsub.s32 0, %v429
        %v431 = vrot.slane %v426, %v430
        %v433 = vmul.f32 %v425, %v431
        %v434 = vld [vmem:[%s2] sm:$0x1]
        %v436 = vlaneseq
        %v437 = vshrl.u32 %v436, 7
        %v438 = vsub.s32 0, %v437
        %v439 = vrot.slane %v434, %v438
        %v441 = vadd.f32 %v433, %v439
        %v442 = vpack.c.bf16 %v441, %v441
        %v443 = vld [vmem:[%s3] sm:$0xf]
        %v444 = vld [vmem:[%s3 + $0x4] sm:$0xf]
        %v445 = vld [vmem:[%s3 + $0x8] sm:$0xf]
        %v446 = vld [vmem:[%s3 + $0xc] sm:$0xf]
        %v451 = vunpack.c.l.b16 %v443
        %v452 = vunpack.c.l.b16 %v444
        %v453 = vunpack.c.l.b16 %v445
        %v454 = vunpack.c.l.b16 %v446
        %v455 = vpack.c.b16 %v452, %v451
        %v456 = vpack.c.b16 %v454, %v453
        %v460 = vsel %vm411, %v442, 0
        %462 = vmatprep.subr.bf16.mxu0 0
        %463 = vmatpush1.bf16.msra.mxu0 %v455
        %464 = vmatprep.subr.bf16.mxu0 0
        %465 = vmatpush1.bf16.msra.mxu0 %v456
        %466 = vmatprep.subr.bf16.mxu0 0
        %467 = vmatpush1.bf16.msra.mxu0 0
        %468 = vmatprep.subr.bf16.mxu0 0
        %469 = vmatpush1.bf16.msra.mxu0 0
        %470 = vmatprep.subr.bf16.mxu0 0
        %471 = vmatpush1.bf16.msra.mxu0 0
        %472 = vmatprep.subr.bf16.mxu0 0
        %473 = vmatpush1.bf16.msra.mxu0 0
        %474 = vmatprep.subr.bf16.mxu0 0
        %475 = vmatpush1.bf16.msra.mxu0 0
        %476 = vmatprep.subr.bf16.mxu0 0
        %477 = vmatpush1.bf16.msra.mxu0 0
        %478 = vmatprep.subr.bf16.mxu0 0
        %479 = vmatpush1.bf16.msra.mxu0 0
        %480 = vmatprep.subr.bf16.mxu0 0
        %481 = vmatpush1.bf16.msra.mxu0 0
        %482 = vmatprep.subr.bf16.mxu0 0
        %483 = vmatpush1.bf16.msra.mxu0 0
        %484 = vmatprep.subr.bf16.mxu0 0
        %485 = vmatpush1.bf16.msra.mxu0 0
        %486 = vmatprep.subr.bf16.mxu0 0
        %487 = vmatpush1.bf16.msra.mxu0 0
        %488 = vmatprep.subr.bf16.mxu0 0
        %489 = vmatpush1.bf16.msra.mxu0 0
        %490 = vmatprep.subr.bf16.mxu0 0
        %491 = vmatpush1.bf16.msra.mxu0 0
        %492 = vmatprep.subr.bf16.mxu0 0
        %493 = vmatpush1.bf16.msra.mxu0 0
        %494 = vmatprep.mubr.bf16.mxu0 0
        %495 = vmatmul.mubr.bf16.gmra.mrb[0].mxu0 %v460
        %v496 = vpop.f32.mrb[0].mxu0
        %v497 = vadd.f32 0.0, %v496
        %v498 = vpop.f32.mrb[0].mxu0
        %v499 = vpop.f32.mrb[0].mxu0
        %v500 = vpop.f32.mrb[0].mxu0
        %501 = vdwg.mxu0
        %v502 = vpack.c.bf16 %v497, %v497
        %v503 = vlaneseq
        %v504 = vshrl.u32 %v503, 7
        %v505 = vlaneseq
        %v506 = vand.u32 %v505, 127
        %vm507 = vcmp.le.s32.totalorder %v506, %v504
        %509 = vrot.lane.b32.xlu0 %v502, 96
        %v510 = vpop.permute.xlu0 %509
        %vm511 = vcmask 64512
        %v513 = vsel %vm511, %v502, 0
        %v516 = vsel %vm511, %v510, 0
        %518 = vmatprep.subr.bf16.mxu0 0
        %519 = vmatpush1.bf16.xpose.msra.mxu0 %v516
        %520 = vmatprep.subr.bf16.mxu0 0
        %521 = vmatpush1.bf16.xpose.msra.mxu0 0
        %522 = vmatprep.subr.bf16.mxu0 0
        %523 = vmatpush1.bf16.xpose.msra.mxu0 0
        %524 = vmatprep.subr.bf16.mxu0 0
        %525 = vmatpush1.bf16.xpose.msra.mxu0 0
        %526 = vmatprep.subr.bf16.mxu0 0
        %527 = vmatpush1.bf16.xpose.msra.mxu0 0
        %528 = vmatprep.subr.bf16.mxu0 0
        %529 = vmatpush1.bf16.xpose.msra.mxu0 0
        %530 = vmatprep.subr.bf16.mxu0 0
        %531 = vmatpush1.bf16.xpose.msra.mxu0 0
        %532 = vmatprep.subr.bf16.mxu0 0
        %533 = vmatpush1.bf16.xpose.msra.mxu0 0
        %534 = vmatprep.subr.bf16.mxu0 0
        %535 = vmatpush1.bf16.xpose.msra.mxu0 0
        %536 = vmatprep.subr.bf16.mxu0 0
        %537 = vmatpush1.bf16.xpose.msra.mxu0 0
        %538 = vmatprep.subr.bf16.mxu0 0
        %539 = vmatpush1.bf16.xpose.msra.mxu0 0
        %540 = vmatprep.subr.bf16.mxu0 0
        %541 = vmatpush1.bf16.xpose.msra.mxu0 0
        %542 = vmatprep.subr.bf16.mxu0 0
        %543 = vmatpush1.bf16.xpose.msra.mxu0 0
        %544 = vmatprep.subr.bf16.mxu0 0
        %545 = vmatpush1.bf16.xpose.msra.mxu0 0
        %546 = vmatprep.subr.bf16.mxu0 0
        %547 = vmatpush1.bf16.xpose.msra.mxu0 0
        %548 = vmatprep.subr.bf16.mxu0 0
        %549 = vmatpush1.bf16.xpose.msra.mxu0 0
        %550 = vmatprep.mubr.bf16.mxu0 0
        %551 = vmatmul.mubr.bf16.gmra.mrb[0].mxu0 %v513
        %v552 = vpop.f32.mrb[0].mxu0
        %v553 = vadd.f32 0.0, %v552
        %v554 = vpop.f32.mrb[0].mxu0
        %v555 = vpop.f32.mrb[0].mxu0
        %v556 = vpop.f32.mrb[0].mxu0
        %557 = vdwg.mxu0
        %v558 = vmul.f32 %v553, 0.35355338
        %v559 = vsel %vm507, %v558, -1e+30
        %v560 = vsel %vm511, %v559, -inf
        %561 = vmax.xlane.f32.xlu0 %v560
        %v562 = vpop.xlane.xlu0 %561
        %v563 = vsub.f32 %v559, %v562
        %v564 = vmul.f32 %v563, 1.442695
        %v565 = vpow.pop %v564
        %v566 = vsel %vm511, %v565, 0.0
        %567 = vadd.xlane.f32.xlu0 %v566
        %v568 = vpop.xlane.xlu0 %567
        %v569 = vrcp.pop %v568
        %v570 = vmul.f32 %v565, %v569
        %v571 = vpack.c.bf16 %v570, %v570
        %572 = vrot.lane.b32.xlu0 %v502, 64
        %v573 = vpop.permute.xlu0 %572
        %v575 = vsel %vm511, %v571, 0
        %vm577 = vcmask 1043456
        %v579 = vsel %vm577, %v573, 0
        %581 = vmatprep.subr.bf16.mxu0 0
        %582 = vmatpush1.bf16.msra.mxu0 %v579
        %583 = vmatprep.subr.bf16.mxu0 0
        %584 = vmatpush1.bf16.msra.mxu0 0
        %585 = vmatprep.subr.bf16.mxu0 0
        %586 = vmatpush1.bf16.msra.mxu0 0
        %587 = vmatprep.subr.bf16.mxu0 0
        %588 = vmatpush1.bf16.msra.mxu0 0
        %589 = vmatprep.subr.bf16.mxu0 0
        %590 = vmatpush1.bf16.msra.mxu0 0
        %591 = vmatprep.subr.bf16.mxu0 0
        %592 = vmatpush1.bf16.msra.mxu0 0
        %593 = vmatprep.subr.bf16.mxu0 0
        %594 = vmatpush1.bf16.msra.mxu0 0
        %595 = vmatprep.subr.bf16.mxu0 0
        %596 = vmatpush1.bf16.msra.mxu0 0
        %597 = vmatprep.subr.bf16.mxu0 0
        %598 = vmatpush1.bf16.msra.mxu0 0
        %599 = vmatprep.subr.bf16.mxu0 0
        %600 = vmatpush1.bf16.msra.mxu0 0
        %601 = vmatprep.subr.bf16.mxu0 0
        %602 = vmatpush1.bf16.msra.mxu0 0
        %603 = vmatprep.subr.bf16.mxu0 0
        %604 = vmatpush1.bf16.msra.mxu0 0
        %605 = vmatprep.subr.bf16.mxu0 0
        %606 = vmatpush1.bf16.msra.mxu0 0
        %607 = vmatprep.subr.bf16.mxu0 0
        %608 = vmatpush1.bf16.msra.mxu0 0
        %609 = vmatprep.subr.bf16.mxu0 0
        %610 = vmatpush1.bf16.msra.mxu0 0
        %611 = vmatprep.subr.bf16.mxu0 0
        %612 = vmatpush1.bf16.msra.mxu0 0
        %613 = vmatprep.mubr.bf16.mxu0 0
        %614 = vmatmul.mubr.bf16.gmra.mrb[0].mxu0 %v575
        %v615 = vpop.f32.mrb[0].mxu0
        %v616 = vadd.f32 0.0, %v615
        %v617 = vpop.f32.mrb[0].mxu0
        %v618 = vpop.f32.mrb[0].mxu0
        %v619 = vpop.f32.mrb[0].mxu0
        %620 = vdwg.mxu0
        %v621 = vpack.c.bf16 %v616, %v616
        %vm622 = vcmask 60416
        %623 = vst.msk [vmem:[#allocation2] sm:$0xf] %vm622, %v621
        %624 = vrot.lane.b32.xlu0 %v502, 120
        %v625 = vpop.permute.xlu0 %624
        %626 = vrot.lane.b32.xlu0 %v502, 88
        %v627 = vpop.permute.xlu0 %626
        %v629 = vsel %vm511, %v625, 0
        %v632 = vsel %vm511, %v627, 0
        %634 = vmatprep.subr.bf16.mxu0 0
        %635 = vmatpush1.bf16.xpose.msra.mxu0 %v632
        %636 = vmatprep.subr.bf16.mxu0 0
        %637 = vmatpush1.bf16.xpose.msra.mxu0 0
        %638 = vmatprep.subr.bf16.mxu0 0
        %639 = vmatpush1.bf16.xpose.msra.mxu0 0
        %640 = vmatprep.subr.bf16.mxu0 0
        %641 = vmatpush1.bf16.xpose.msra.mxu0 0
        %642 = vmatprep.subr.bf16.mxu0 0
        %643 = vmatpush1.bf16.xpose.msra.mxu0 0
        %644 = vmatprep.subr.bf16.mxu0 0
        %645 = vmatpush1.bf16.xpose.msra.mxu0 0
        %646 = vmatprep.subr.bf16.mxu0 0
        %647 = vmatpush1.bf16.xpose.msra.mxu0 0
        %648 = vmatprep.subr.bf16.mxu0 0
        %649 = vmatpush1.bf16.xpose.msra.mxu0 0
        %650 = vmatprep.subr.bf16.mxu0 0
        %651 = vmatpush1.bf16.xpose.msra.mxu0 0
        %652 = vmatprep.subr.bf16.mxu0 0
        %653 = vmatpush1.bf16.xpose.msra.mxu0 0
        %654 = vmatprep.subr.bf16.mxu0 0
        %655 = vmatpush1.bf16.xpose.msra.mxu0 0
        %656 = vmatprep.subr.bf16.mxu0 0
        %657 = vmatpush1.bf16.xpose.msra.mxu0 0
        %658 = vmatprep.subr.bf16.mxu0 0
        %659 = vmatpush1.bf16.xpose.msra.mxu0 0
        %660 = vmatprep.subr.bf16.mxu0 0
        %661 = vmatpush1.bf16.xpose.msra.mxu0 0
        %662 = vmatprep.subr.bf16.mxu0 0
        %663 = vmatpush1.bf16.xpose.msra.mxu0 0
        %664 = vmatprep.subr.bf16.mxu0 0
        %665 = vmatpush1.bf16.xpose.msra.mxu0 0
        %666 = vmatprep.mubr.bf16.mxu0 0
        %667 = vmatmul.mubr.bf16.gmra.mrb[0].mxu0 %v629
        %v668 = vpop.f32.mrb[0].mxu0
        %v669 = vadd.f32 0.0, %v668
        %v670 = vpop.f32.mrb[0].mxu0
        %v671 = vpop.f32.mrb[0].mxu0
        %v672 = vpop.f32.mrb[0].mxu0
        %673 = vdwg.mxu0
        %v674 = vmul.f32 %v669, 0.35355338
        %v675 = vsel %vm507, %v674, -1e+30
        %v676 = vsel %vm511, %v675, -inf
        %677 = vmax.xlane.f32.xlu0 %v676
        %v678 = vpop.xlane.xlu0 %677
        %v679 = vsub.f32 %v675, %v678
        %v680 = vmul.f32 %v679, 1.442695
        %v681 = vpow.pop %v680
        %v682 = vsel %vm511, %v681, 0.0
        %683 = vadd.xlane.f32.xlu0 %v682
        %v684 = vpop.xlane.xlu0 %683
        %v685 = vrcp.pop %v684
        %v686 = vmul.f32 %v681, %v685
        %v687 = vpack.c.bf16 %v686, %v686
        %688 = vrot.lane.b32.xlu0 %v502, 56
        %v689 = vpop.permute.xlu0 %688
        %v691 = vsel %vm511, %v687, 0
        %v694 = vsel %vm577, %v689, 0
        %696 = vmatprep.subr.bf16.mxu0 0
        %697 = vmatpush1.bf16.msra.mxu0 %v694
        %698 = vmatprep.subr.bf16.mxu0 0
        %699 = vmatpush1.bf16.msra.mxu0 0
        %700 = vmatprep.subr.bf16.mxu0 0
        %701 = vmatpush1.bf16.msra.mxu0 0
        %702 = vmatprep.subr.bf16.mxu0 0
        %703 = vmatpush1.bf16.msra.mxu0 0
        %704 = vmatprep.subr.bf16.mxu0 0
        %705 = vmatpush1.bf16.msra.mxu0 0
        %706 = vmatprep.subr.bf16.mxu0 0
        %707 = vmatpush1.bf16.msra.mxu0 0
        %708 = vmatprep.subr.bf16.mxu0 0
        %709 = vmatpush1.bf16.msra.mxu0 0
        %710 = vmatprep.subr.bf16.mxu0 0
        %711 = vmatpush1.bf16.msra.mxu0 0
        %712 = vmatprep.subr.bf16.mxu0 0
        %713 = vmatpush1.bf16.msra.mxu0 0
        %714 = vmatprep.subr.bf16.mxu0 0
        %715 = vmatpush1.bf16.msra.mxu0 0
        %716 = vmatprep.subr.bf16.mxu0 0
        %717 = vmatpush1.bf16.msra.mxu0 0
        %718 = vmatprep.subr.bf16.mxu0 0
        %719 = vmatpush1.bf16.msra.mxu0 0
        %720 = vmatprep.subr.bf16.mxu0 0
        %721 = vmatpush1.bf16.msra.mxu0 0
        %722 = vmatprep.subr.bf16.mxu0 0
        %723 = vmatpush1.bf16.msra.mxu0 0
        %724 = vmatprep.subr.bf16.mxu0 0
        %725 = vmatpush1.bf16.msra.mxu0 0
        %726 = vmatprep.subr.bf16.mxu0 0
        %727 = vmatpush1.bf16.msra.mxu0 0
        %728 = vmatprep.mubr.bf16.mxu0 0
        %729 = vmatmul.mubr.bf16.gmra.mrb[0].mxu0 %v691
        %v730 = vpop.f32.mrb[0].mxu0
        %v731 = vadd.f32 0.0, %v730
        %v732 = vpop.f32.mrb[0].mxu0
        %v733 = vpop.f32.mrb[0].mxu0
        %v734 = vpop.f32.mrb[0].mxu0
        %735 = vdwg.mxu0
        %v736 = vpack.c.bf16 %v731, %v731
        %v738 = vunpack.c.l.b16 %v736
        %v739 = vpack.c.b16 %v738, %v738
        %740 = vrot.lane.b32.xlu0 %v739, 8
        %v741 = vpop.permute.xlu0 %740
        %vm743 = vcmask 126016
        %744 = vst.msk [vmem:[#allocation2] sm:$0xf] %vm743, %v741
        %745 = vrot.lane.b32.xlu0 %v502, 112
        %v746 = vpop.permute.xlu0 %745
        %747 = vrot.lane.b32.xlu0 %v502, 80
        %v748 = vpop.permute.xlu0 %747
        %v750 = vsel %vm511, %v746, 0
        %v753 = vsel %vm511, %v748, 0
        %755 = vmatprep.subr.bf16.mxu0 0
        %756 = vmatpush1.bf16.xpose.msra.mxu0 %v753
        %757 = vmatprep.subr.bf16.mxu0 0
        %758 = vmatpush1.bf16.xpose.msra.mxu0 0
        %759 = vmatprep.subr.bf16.mxu0 0
        %760 = vmatpush1.bf16.xpose.msra.mxu0 0
        %761 = vmatprep.subr.bf16.mxu0 0
        %762 = vmatpush1.bf16.xpose.msra.mxu0 0
        %763 = vmatprep.subr.bf16.mxu0 0
        %764 = vmatpush1.bf16.xpose.msra.mxu0 0
        %765 = vmatprep.subr.bf16.mxu0 0
        %766 = vmatpush1.bf16.xpose.msra.mxu0 0
        %767 = vmatprep.subr.bf16.mxu0 0
        %768 = vmatpush1.bf16.xpose.msra.mxu0 0
        %769 = vmatprep.subr.bf16.mxu0 0
        %770 = vmatpush1.bf16.xpose.msra.mxu0 0
        %771 = vmatprep.subr.bf16.mxu0 0
        %772 = vmatpush1.bf16.xpose.msra.mxu0 0
        %773 = vmatprep.subr.bf16.mxu0 0
        %774 = vmatpush1.bf16.xpose.msra.mxu0 0
        %775 = vmatprep.subr.bf16.mxu0 0
        %776 = vmatpush1.bf16.xpose.msra.mxu0 0
        %777 = vmatprep.subr.bf16.mxu0 0
        %778 = vmatpush1.bf16.xpose.msra.mxu0 0
        %779 = vmatprep.subr.bf16.mxu0 0
        %780 = vmatpush1.bf16.xpose.msra.mxu0 0
        %781 = vmatprep.subr.bf16.mxu0 0
        %782 = vmatpush1.bf16.xpose.msra.mxu0 0
        %783 = vmatprep.subr.bf16.mxu0 0
        %784 = vmatpush1.bf16.xpose.msra.mxu0 0
        %785 = vmatprep.subr.bf16.mxu0 0
        %786 = vmatpush1.bf16.xpose.msra.mxu0 0
        %787 = vmatprep.mubr.bf16.mxu0 0
        %788 = vmatmul.mubr.bf16.gmra.mrb[0].mxu0 %v750
        %v789 = vpop.f32.mrb[0].mxu0
        %v790 = vadd.f32 0.0, %v789
        %v791 = vpop.f32.mrb[0].mxu0
        %v792 = vpop.f32.mrb[0].mxu0
        %v793 = vpop.f32.mrb[0].mxu0
        %794 = vdwg.mxu0
        %v795 = vmul.f32 %v790, 0.35355338
        %v796 = vsel %vm507, %v795, -1e+30
        %v797 = vsel %vm511, %v796, -inf
        %798 = vmax.xlane.f32.xlu0 %v797
        %v799 = vpop.xlane.xlu0 %798
        %v800 = vsub.f32 %v796, %v799
        %v801 = vmul.f32 %v800, 1.442695
        %v802 = vpow.pop %v801
        %v803 = vsel %vm511, %v802, 0.0
        %804 = vadd.xlane.f32.xlu0 %v803
        %v805 = vpop.xlane.xlu0 %804
        %v806 = vrcp.pop %v805
        %v807 = vmul.f32 %v802, %v806
        %v808 = vpack.c.bf16 %v807, %v807
        %809 = vrot.lane.b32.xlu0 %v502, 48
        %v810 = vpop.permute.xlu0 %809
        %v812 = vsel %vm511, %v808, 0
        %v815 = vsel %vm577, %v810, 0
        %817 = vmatprep.subr.bf16.mxu0 0
        %818 = vmatpush1.bf16.msra.mxu0 %v815
        %819 = vmatprep.subr.bf16.mxu0 0
        %820 = vmatpush1.bf16.msra.mxu0 0
        %821 = vmatprep.subr.bf16.mxu0 0
        %822 = vmatpush1.bf16.msra.mxu0 0
        %823 = vmatprep.subr.bf16.mxu0 0
        %824 = vmatpush1.bf16.msra.mxu0 0
        %825 = vmatprep.subr.bf16.mxu0 0
        %826 = vmatpush1.bf16.msra.mxu0 0
        %827 = vmatprep.subr.bf16.mxu0 0
        %828 = vmatpush1.bf16.msra.mxu0 0
        %829 = vmatprep.subr.bf16.mxu0 0
        %830 = vmatpush1.bf16.msra.mxu0 0
        %831 = vmatprep.subr.bf16.mxu0 0
        %832 = vmatpush1.bf16.msra.mxu0 0
        %833 = vmatprep.subr.bf16.mxu0 0
        %834 = vmatpush1.bf16.msra.mxu0 0
        %835 = vmatprep.subr.bf16.mxu0 0
        %836 = vmatpush1.bf16.msra.mxu0 0
        %837 = vmatprep.subr.bf16.mxu0 0
        %838 = vmatpush1.bf16.msra.mxu0 0
        %839 = vmatprep.subr.bf16.mxu0 0
        %840 = vmatpush1.bf16.msra.mxu0 0
        %841 = vmatprep.subr.bf16.mxu0 0
        %842 = vmatpush1.bf16.msra.mxu0 0
        %843 = vmatprep.subr.bf16.mxu0 0
        %844 = vmatpush1.bf16.msra.mxu0 0
        %845 = vmatprep.subr.bf16.mxu0 0
        %846 = vmatpush1.bf16.msra.mxu0 0
        %847 = vmatprep.subr.bf16.mxu0 0
        %848 = vmatpush1.bf16.msra.mxu0 0
        %849 = vmatprep.mubr.bf16.mxu0 0
        %850 = vmatmul.mubr.bf16.gmra.mrb[0].mxu0 %v812
        %v851 = vpop.f32.mrb[0].mxu0
        %v852 = vadd.f32 0.0, %v851
        %v853 = vpop.f32.mrb[0].mxu0
        %v854 = vpop.f32.mrb[0].mxu0
        %v855 = vpop.f32.mrb[0].mxu0
        %856 = vdwg.mxu0
        %v857 = vpack.c.bf16 %v852, %v852
        %v859 = vunpack.c.l.b16 %v857
        %v860 = vpack.c.b16 %v859, %v859
        %861 = vrot.lane.b32.xlu0 %v860, 16
        %v862 = vpop.permute.xlu0 %861
        %vm864 = vcmask 191616
        %865 = vst.msk [vmem:[#allocation2] sm:$0xf] %vm864, %v862
        %866 = vrot.lane.b32.xlu0 %v502, 104
        %v867 = vpop.permute.xlu0 %866
        %868 = vrot.lane.b32.xlu0 %v502, 72
        %v869 = vpop.permute.xlu0 %868
        %v871 = vsel %vm511, %v867, 0
        %v874 = vsel %vm511, %v869, 0
        %876 = vmatprep.subr.bf16.mxu0 0
        %877 = vmatpush1.bf16.xpose.msra.mxu0 %v874
        %878 = vmatprep.subr.bf16.mxu0 0
        %879 = vmatpush1.bf16.xpose.msra.mxu0 0
        %880 = vmatprep.subr.bf16.mxu0 0
        %881 = vmatpush1.bf16.xpose.msra.mxu0 0
        %882 = vmatprep.subr.bf16.mxu0 0
        %883 = vmatpush1.bf16.xpose.msra.mxu0 0
        %884 = vmatprep.subr.bf16.mxu0 0
        %885 = vmatpush1.bf16.xpose.msra.mxu0 0
        %886 = vmatprep.subr.bf16.mxu0 0
        %887 = vmatpush1.bf16.xpose.msra.mxu0 0
        %888 = vmatprep.subr.bf16.mxu0 0
        %889 = vmatpush1.bf16.xpose.msra.mxu0 0
        %890 = vmatprep.subr.bf16.mxu0 0
        %891 = vmatpush1.bf16.xpose.msra.mxu0 0
        %892 = vmatprep.subr.bf16.mxu0 0
        %893 = vmatpush1.bf16.xpose.msra.mxu0 0
        %894 = vmatprep.subr.bf16.mxu0 0
        %895 = vmatpush1.bf16.xpose.msra.mxu0 0
        %896 = vmatprep.subr.bf16.mxu0 0
        %897 = vmatpush1.bf16.xpose.msra.mxu0 0
        %898 = vmatprep.subr.bf16.mxu0 0
        %899 = vmatpush1.bf16.xpose.msra.mxu0 0
        %900 = vmatprep.subr.bf16.mxu0 0
        %901 = vmatpush1.bf16.xpose.msra.mxu0 0
        %902 = vmatprep.subr.bf16.mxu0 0
        %903 = vmatpush1.bf16.xpose.msra.mxu0 0
        %904 = vmatprep.subr.bf16.mxu0 0
        %905 = vmatpush1.bf16.xpose.msra.mxu0 0
        %906 = vmatprep.subr.bf16.mxu0 0
        %907 = vmatpush1.bf16.xpose.msra.mxu0 0
        %908 = vmatprep.mubr.bf16.mxu0 0
        %909 = vmatmul.mubr.bf16.gmra.mrb[0].mxu0 %v871
        %v910 = vpop.f32.mrb[0].mxu0
        %v911 = vadd.f32 0.0, %v910
        %v912 = vpop.f32.mrb[0].mxu0
        %v913 = vpop.f32.mrb[0].mxu0
        %v914 = vpop.f32.mrb[0].mxu0
        %915 = vdwg.mxu0
        %v916 = vmul.f32 %v911, 0.35355338
        %v917 = vsel %vm507, %v916, -1e+30
        %v918 = vsel %vm511, %v917, -inf
        %919 = vmax.xlane.f32.xlu0 %v918
        %v920 = vpop.xlane.xlu0 %919
        %v921 = vsub.f32 %v917, %v920
        %v922 = vmul.f32 %v921, 1.442695
        %v923 = vpow.pop %v922
        %v924 = vsel %vm511, %v923, 0.0
        %925 = vadd.xlane.f32.xlu0 %v924
        %v926 = vpop.xlane.xlu0 %925
        %v927 = vrcp.pop %v926
        %v928 = vmul.f32 %v923, %v927
        %v929 = vpack.c.bf16 %v928, %v928
        %930 = vrot.lane.b32.xlu0 %v502, 40
        %v931 = vpop.permute.xlu0 %930
        %v933 = vsel %vm511, %v929, 0
        %v936 = vsel %vm577, %v931, 0
        %938 = vmatprep.subr.bf16.mxu0 0
        %939 = vmatpush1.bf16.msra.mxu0 %v936
        %940 = vmatprep.subr.bf16.mxu0 0
        %941 = vmatpush1.bf16.msra.mxu0 0
        %942 = vmatprep.subr.bf16.mxu0 0
        %943 = vmatpush1.bf16.msra.mxu0 0
        %944 = vmatprep.subr.bf16.mxu0 0
        %945 = vmatpush1.bf16.msra.mxu0 0
        %946 = vmatprep.subr.bf16.mxu0 0
        %947 = vmatpush1.bf16.msra.mxu0 0
        %948 = vmatprep.subr.bf16.mxu0 0
        %949 = vmatpush1.bf16.msra.mxu0 0
        %950 = vmatprep.subr.bf16.mxu0 0
        %951 = vmatpush1.bf16.msra.mxu0 0
        %952 = vmatprep.subr.bf16.mxu0 0
        %953 = vmatpush1.bf16.msra.mxu0 0
        %954 = vmatprep.subr.bf16.mxu0 0
        %955 = vmatpush1.bf16.msra.mxu0 0
        %956 = vmatprep.subr.bf16.mxu0 0
        %957 = vmatpush1.bf16.msra.mxu0 0
        %958 = vmatprep.subr.bf16.mxu0 0
        %959 = vmatpush1.bf16.msra.mxu0 0
        %960 = vmatprep.subr.bf16.mxu0 0
        %961 = vmatpush1.bf16.msra.mxu0 0
        %962 = vmatprep.subr.bf16.mxu0 0
        %963 = vmatpush1.bf16.msra.mxu0 0
        %964 = vmatprep.subr.bf16.mxu0 0
        %965 = vmatpush1.bf16.msra.mxu0 0
        %966 = vmatprep.subr.bf16.mxu0 0
        %967 = vmatpush1.bf16.msra.mxu0 0
        %968 = vmatprep.subr.bf16.mxu0 0
        %969 = vmatpush1.bf16.msra.mxu0 0
        %970 = vmatprep.mubr.bf16.mxu0 0
        %971 = vmatmul.mubr.bf16.gmra.mrb[0].mxu0 %v933
        %v972 = vpop.f32.mrb[0].mxu0
        %v973 = vadd.f32 0.0, %v972
        %v974 = vpop.f32.mrb[0].mxu0
        %v975 = vpop.f32.mrb[0].mxu0
        %v976 = vpop.f32.mrb[0].mxu0
        %977 = vdwg.mxu0
        %v978 = vpack.c.bf16 %v973, %v973
        %v980 = vunpack.c.l.b16 %v978
        %v981 = vpack.c.b16 %v980, %v980
        %982 = vrot.lane.b32.xlu0 %v981, 24
        %v983 = vpop.permute.xlu0 %982
        %vm985 = vcmask 257216
        %986 = vst.msk [vmem:[#allocation2] sm:$0xf] %vm985, %v983
        %v987 = vld [vmem:[#allocation2] sm:$0xf]
        %v988 = vld [vmem:[%s4] sm:$0xf]
        %v989 = vld [vmem:[%s4 + $0x4] sm:$0xf]
        %v990 = vld [vmem:[%s4 + $0x8] sm:$0xf]
        %v991 = vld [vmem:[%s4 + $0xc] sm:$0xf]
        %v992 = vld [vmem:[%s5] sm:$0x1]
        %v994 = vlaneseq
        %v995 = vshrl.u32 %v994, 7
        %v996 = vsub.s32 0, %v995
        %v997 = vrot.slane %v992, %v996
        %v1003 = vunpack.c.l.b16 %v988
        %v1004 = vunpack.c.l.b16 %v989
        %v1005 = vunpack.c.l.b16 %v990
        %v1006 = vunpack.c.l.b16 %v991
        %v1007 = vpack.c.b16 %v1004, %v1003
        %v1008 = vpack.c.b16 %v1006, %v1005
        %v1012 = vsel %vm411, %v987, 0
        %1014 = vmatprep.subr.bf16.mxu0 0
        %1015 = vmatpush1.bf16.msra.mxu0 %v1007
        %1016 = vmatprep.subr.bf16.mxu0 0
        %1017 = vmatpush1.bf16.msra.mxu0 %v1008
        %1018 = vmatprep.subr.bf16.mxu0 0
        %1019 = vmatpush1.bf16.msra.mxu0 0
        %1020 = vmatprep.subr.bf16.mxu0 0
        %1021 = vmatpush1.bf16.msra.mxu0 0
        %1022 = vmatprep.subr.bf16.mxu0 0
        %1023 = vmatpush1.bf16.msra.mxu0 0
        %1024 = vmatprep.subr.bf16.mxu0 0
        %1025 = vmatpush1.bf16.msra.mxu0 0
        %1026 = vmatprep.subr.bf16.mxu0 0
        %1027 = vmatpush1.bf16.msra.mxu0 0
        %1028 = vmatprep.subr.bf16.mxu0 0
        %1029 = vmatpush1.bf16.msra.mxu0 0
        %1030 = vmatprep.subr.bf16.mxu0 0
        %1031 = vmatpush1.bf16.msra.mxu0 0
        %1032 = vmatprep.subr.bf16.mxu0 0
        %1033 = vmatpush1.bf16.msra.mxu0 0
        %1034 = vmatprep.subr.bf16.mxu0 0
        %1035 = vmatpush1.bf16.msra.mxu0 0
        %1036 = vmatprep.subr.bf16.mxu0 0
        %1037 = vmatpush1.bf16.msra.mxu0 0
        %1038 = vmatprep.subr.bf16.mxu0 0
        %1039 = vmatpush1.bf16.msra.mxu0 0
        %1040 = vmatprep.subr.bf16.mxu0 0
        %1041 = vmatpush1.bf16.msra.mxu0 0
        %1042 = vmatprep.subr.bf16.mxu0 0
        %1043 = vmatpush1.bf16.msra.mxu0 0
        %1044 = vmatprep.subr.bf16.mxu0 0
        %1045 = vmatpush1.bf16.msra.mxu0 0
        %1046 = vmatprep.mubr.bf16.mxu0 0
        %1047 = vmatmul.mubr.bf16.gmra.mrb[0].mxu0 %v1012
        %v1048 = vpop.f32.mrb[0].mxu0
        %v1049 = vadd.f32 %v997, %v1048
        %v1050 = vpop.f32.mrb[0].mxu0
        %v1051 = vpop.f32.mrb[0].mxu0
        %v1052 = vpop.f32.mrb[0].mxu0
        %1053 = vdwg.mxu0
        %v1054 = vadd.f32 %v410, %v1049
        %v1055 = vsel %vm411, %v1054, 0.0
        %1056 = vadd.xlane.f32.xlu0 %v1055
        %v1057 = vpop.xlane.xlu0 %1056
        %v1058 = vmul.f32 %v1057, %v415
        %v1059 = vsub.f32 %v1054, %v1058
        %v1060 = vmul.f32 %v1059, %v1059
        %v1061 = vsel %vm411, %v1060, 0.0
        %1062 = vadd.xlane.f32.xlu0 %v1061
        %v1063 = vpop.xlane.xlu0 %1062
        %v1064 = vmul.f32 %v1063, %v415
        %v1065 = vadd.f32 %v1064, 1e-05
        %v1066 = vrsqrt.pop %v1065
        %v1067 = vmul.f32 %v1059, %v1066
        %v1068 = vld [vmem:[%s6] sm:$0x1]
        %v1070 = vlaneseq
        %v1071 = vshrl.u32 %v1070, 7
        %v1072 = vsub.s32 0, %v1071
        %v1073 = vrot.slane %v1068, %v1072
        %v1075 = vmul.f32 %v1067, %v1073
        %v1076 = vld [vmem:[%s7] sm:$0x1]
        %v1078 = vlaneseq
        %v1079 = vshrl.u32 %v1078, 7
        %v1080 = vsub.s32 0, %v1079
        %v1081 = vrot.slane %v1076, %v1080
        %v1083 = vadd.f32 %v1075, %v1081
        %v1084 = vpack.c.bf16 %v1083, %v1083
        %v1085 = vld [vmem:[%s8] sm:$0xf]
        %v1086 = vld [vmem:[%s8 + $0x4] sm:$0xf]
        %v1087 = vld [vmem:[%s8 + $0x8] sm:$0xf]
        %v1088 = vld [vmem:[%s8 + $0xc] sm:$0xf]
        %v1089 = vld [vmem:[%s9] sm:$0x1]
        %v1091 = vlaneseq
        %v1092 = vshrl.u32 %v1091, 7
        %v1093 = vsub.s32 0, %v1092
        %v1094 = vrot.slane %v1089, %v1093
        %v1100 = vunpack.c.l.b16 %v1085
        %v1101 = vunpack.c.l.b16 %v1086
        %v1102 = vunpack.c.l.b16 %v1087
        %v1103 = vunpack.c.l.b16 %v1088
        %v1104 = vpack.c.b16 %v1101, %v1100
        %v1105 = vpack.c.b16 %v1103, %v1102
        %v1109 = vsel %vm411, %v1084, 0
        %1111 = vmatprep.subr.bf16.mxu0 0
        %1112 = vmatpush1.bf16.msra.mxu0 %v1104
        %1113 = vmatprep.subr.bf16.mxu0 0
        %1114 = vmatpush1.bf16.msra.mxu0 %v1105
        %1115 = vmatprep.subr.bf16.mxu0 0
        %1116 = vmatpush1.bf16.msra.mxu0 0
        %1117 = vmatprep.subr.bf16.mxu0 0
        %1118 = vmatpush1.bf16.msra.mxu0 0
        %1119 = vmatprep.subr.bf16.mxu0 0
        %1120 = vmatpush1.bf16.msra.mxu0 0
        %1121 = vmatprep.subr.bf16.mxu0 0
        %1122 = vmatpush1.bf16.msra.mxu0 0
        %1123 = vmatprep.subr.bf16.mxu0 0
        %1124 = vmatpush1.bf16.msra.mxu0 0
        %1125 = vmatprep.subr.bf16.mxu0 0
        %1126 = vmatpush1.bf16.msra.mxu0 0
        %1127 = vmatprep.subr.bf16.mxu0 0
        %1128 = vmatpush1.bf16.msra.mxu0 0
        %1129 = vmatprep.subr.bf16.mxu0 0
        %1130 = vmatpush1.bf16.msra.mxu0 0
        %1131 = vmatprep.subr.bf16.mxu0 0
        %1132 = vmatpush1.bf16.msra.mxu0 0
        %1133 = vmatprep.subr.bf16.mxu0 0
        %1134 = vmatpush1.bf16.msra.mxu0 0
        %1135 = vmatprep.subr.bf16.mxu0 0
        %1136 = vmatpush1.bf16.msra.mxu0 0
        %1137 = vmatprep.subr.bf16.mxu0 0
        %1138 = vmatpush1.bf16.msra.mxu0 0
        %1139 = vmatprep.subr.bf16.mxu0 0
        %1140 = vmatpush1.bf16.msra.mxu0 0
        %1141 = vmatprep.subr.bf16.mxu0 0
        %1142 = vmatpush1.bf16.msra.mxu0 0
        %1143 = vmatprep.mubr.bf16.mxu0 0
        %1144 = vmatmul.mubr.bf16.gmra.mrb[0].mxu0 %v1109
        %v1145 = vpop.f32.mrb[0].mxu0
        %v1146 = vadd.f32 %v1094, %v1145
        %v1147 = vpop.f32.mrb[0].mxu0
        %v1148 = vpop.f32.mrb[0].mxu0
        %v1149 = vpop.f32.mrb[0].mxu0
        %1150 = vdwg.mxu0
        %v1151 = vmax.f32 %v1146, 0.0
        %v1152 = vpack.c.bf16 %v1151, %v1151
        %v1153 = vld [vmem:[%s10] sm:$0xf]
        %v1154 = vld [vmem:[%s10 + $0x4] sm:$0xf]
        %v1155 = vld [vmem:[%s10 + $0x8] sm:$0xf]
        %v1156 = vld [vmem:[%s10 + $0xc] sm:$0xf]
        %v1157 = vld [vmem:[%s10 + $0x10] sm:$0xf]
        %v1158 = vld [vmem:[%s10 + $0x14] sm:$0xf]
        %v1159 = vld [vmem:[%s10 + $0x18] sm:$0xf]
        %v1160 = vld [vmem:[%s10 + $0x1c] sm:$0xf]
        %v1161 = vld [vmem:[%s10 + $0x20] sm:$0xf]
        %v1162 = vld [vmem:[%s10 + $0x24] sm:$0xf]
        %v1163 = vld [vmem:[%s10 + $0x28] sm:$0xf]
        %v1164 = vld [vmem:[%s10 + $0x2c] sm:$0xf]
        %v1165 = vld [vmem:[%s10 + $0x30] sm:$0xf]
        %v1166 = vld [vmem:[%s10 + $0x34] sm:$0xf]
        %v1167 = vld [vmem:[%s10 + $0x38] sm:$0xf]
        %v1168 = vld [vmem:[%s10 + $0x3c] sm:$0xf]
        %v1169 = vld [vmem:[%s11] sm:$0x1]
        %v1171 = vlaneseq
        %v1172 = vshrl.u32 %v1171, 7
        %v1173 = vsub.s32 0, %v1172
        %v1174 = vrot.slane %v1169, %v1173
        %v1192 = vunpack.c.l.b16 %v1153
        %v1193 = vunpack.c.l.b16 %v1154
        %v1194 = vunpack.c.l.b16 %v1155
        %v1195 = vunpack.c.l.b16 %v1156
        %v1196 = vunpack.c.l.b16 %v1157
        %v1197 = vunpack.c.l.b16 %v1158
        %v1198 = vunpack.c.l.b16 %v1159
        %v1199 = vunpack.c.l.b16 %v1160
        %v1200 = vunpack.c.l.b16 %v1161
        %v1201 = vunpack.c.l.b16 %v1162
        %v1202 = vunpack.c.l.b16 %v1163
        %v1203 = vunpack.c.l.b16 %v1164
        %v1204 = vunpack.c.l.b16 %v1165
        %v1205 = vunpack.c.l.b16 %v1166
        %v1206 = vunpack.c.l.b16 %v1167
        %v1207 = vunpack.c.l.b16 %v1168
        %v1208 = vpack.c.b16 %v1193, %v1192
        %v1209 = vpack.c.b16 %v1195, %v1194
        %v1210 = vpack.c.b16 %v1197, %v1196
        %v1211 = vpack.c.b16 %v1199, %v1198
        %v1212 = vpack.c.b16 %v1201, %v1200
        %v1213 = vpack.c.b16 %v1203, %v1202
        %v1214 = vpack.c.b16 %v1205, %v1204
        %v1215 = vpack.c.b16 %v1207, %v1206
        %1224 = vmatprep.subr.bf16.mxu0 0
        %1225 = vmatpush1.bf16.msra.mxu0 %v1208
        %1226 = vmatprep.subr.bf16.mxu0 0
        %1227 = vmatpush1.bf16.msra.mxu0 %v1209
        %1228 = vmatprep.subr.bf16.mxu0 0
        %1229 = vmatpush1.bf16.msra.mxu0 %v1210
        %1230 = vmatprep.subr.bf16.mxu0 0
        %1231 = vmatpush1.bf16.msra.mxu0 %v1211
        %1232 = vmatprep.subr.bf16.mxu0 0
        %1233 = vmatpush1.bf16.msra.mxu0 %v1212
        %1234 = vmatprep.subr.bf16.mxu0 0
        %1235 = vmatpush1.bf16.msra.mxu0 %v1213
        %1236 = vmatprep.subr.bf16.mxu0 0
        %1237 = vmatpush1.bf16.msra.mxu0 %v1214
        %1238 = vmatprep.subr.bf16.mxu0 0
        %1239 = vmatpush1.bf16.msra.mxu0 %v1215
        %1240 = vmatprep.subr.bf16.mxu0 0
        %1241 = vmatpush1.bf16.msra.mxu0 0
        %1242 = vmatprep.subr.bf16.mxu0 0
        %1243 = vmatpush1.bf16.msra.mxu0 0
        %1244 = vmatprep.subr.bf16.mxu0 0
        %1245 = vmatpush1.bf16.msra.mxu0 0
        %1246 = vmatprep.subr.bf16.mxu0 0
        %1247 = vmatpush1.bf16.msra.mxu0 0
        %1248 = vmatprep.subr.bf16.mxu0 0
        %1249 = vmatpush1.bf16.msra.mxu0 0
        %1250 = vmatprep.subr.bf16.mxu0 0
        %1251 = vmatpush1.bf16.msra.mxu0 0
        %1252 = vmatprep.subr.bf16.mxu0 0
        %1253 = vmatpush1.bf16.msra.mxu0 0
        %1254 = vmatprep.subr.bf16.mxu0 0
        %1255 = vmatpush1.bf16.msra.mxu0 0
        %1256 = vmatprep.mubr.bf16.mxu0 0
        %1257 = vmatmul.mubr.bf16.gmra.mrb[0].mxu0 %v1152
        %v1258 = vpop.f32.mrb[0].mxu0
        %v1259 = vadd.f32 %v1174, %v1258
        %v1260 = vpop.f32.mrb[0].mxu0
        %v1261 = vpop.f32.mrb[0].mxu0
        %v1262 = vpop.f32.mrb[0].mxu0
        %1263 = vdwg.mxu0
        %v1264 = vadd.f32 %v1054, %v1259
        %1265 = vst.msk [vmem:[%s404] sm:$0xff] %vm411, %v1264
        %s1266 = sand.u32 %s291, 1
        %s1267 = scalar_lea.sflag [#allocation4], %s1266
        %s1268 = sand.u32 %s291, 1
        %s1269 = smul.addr %s1268, 8
        %s1270 = scalar_lea.vmem [#allocation3], %s1269
        // Predicated region
        $region69: #{tpu_custom_call.1} parent=67 // pred_check
          %p1271 = pneg %p301
        $region70: #{tpu_custom_call.1} parent=67 // pred_check_branch
          %1273 = sbr.rel (%p1271) target = $region72
        $region71: #{tpu_custom_call.1} parent=67 // pred_region
          %s1275 = ssub.s32 128, 128
          %1276 = vsyncadd %s1267, %s1275
          %s1277 = smul.addr %s26, 128
          %s1278 = scalar_lea.hbm %s12, %s1277
          %s1280 = sshll.u32 %s1270, 4
          %s1281 = int_to_ptr.vmem [resolvable:$true] %s1280
          %1283 = dma.vmem_to_hbm [thread:$0]  %s1281, 128, %s1278, %s1267
        $region72: #{tpu_custom_call.1} parent=67 // pred_fallthru
          _
      $region68: #{tpu_custom_call.1} parent=5 // pred_fallthru
        _
      %p1284 = scmp.le.s32.totalorder 2, %s21
      // Predicated region
      $region73: #{tpu_custom_call.1} parent=5 // pred_check
        %p1285 = pneg %p1284
      $region74: #{tpu_custom_call.1} parent=5 // pred_check_branch
        %1287 = sbr.rel (%p1285) target = $region76
      $region75: #{tpu_custom_call.1} parent=5 // pred_region
        %s1288 = ssub.s32 %s21, 2
        // Predicated region
        $region77: #{tpu_custom_call.1} parent=75 // pred_check
          %p1289 = pneg %p307
        $region78: #{tpu_custom_call.1} parent=75 // pred_check_branch
          %1291 = sbr.rel (%p1289) target = $region80
        $region79: #{tpu_custom_call.1} parent=75 // pred_region
          %s1292 = sand.u32 %s292, 1
          %s1293 = scalar_lea.sflag [#allocation4], %s1292
          %s1294 = sand.u32 %s292, 1
          %s1295 = smul.addr %s1294, 8
          %s1296 = scalar_lea.vmem [#allocation3], %s1295
          %1297 = dma.done %s1293, 128
        $region80: #{tpu_custom_call.1} parent=75 // pred_fallthru
          _
      $region76: #{tpu_custom_call.1} parent=5 // pred_fallthru
        _
    $region6: #{tpu_custom_call.1} parent=1 // loop_footer
      %s25 = sadd.s32 1, %s21
    $region7: #{tpu_custom_call.1} parent=1 // loop_footer_branch
      %20 = sbr.rel target = $region3
    $region8: #{tpu_custom_call.1} parent=1 // loop_exit
      _
    %1298 = vsyncpa [#allocation4], 1
    %s1299 = scalar_lea.sflag [#allocation4], 1
    %1300 = vsyncpa %s1299, 1

</llo_original>
